<compile_context>
chip_gen: v7x
topology: tpu7x:2x2x1
jax: 0.10.0
libtpu: 0.0.40
codegen_flags: <defaults>
</compile_context>

<pallas_src>
import functools
import math

import jax
import jax.numpy as jnp
import numpy as np
from jax import lax
from jax.experimental import pallas as pl
from jax.experimental.pallas import tpu as pltpu


# ----------------------------- configuration --------------------------------
N_PROTOTYPES = 8
BAG_SIZE = 16
N_CLASSES = 3
STRIDE_RATIO = 0.5
STRIDE = max(1, int(BAG_SIZE * STRIDE_RATIO))        # 8
FEATURES = ("min", "max", "mean", "cos")             # features_to_use_str
INPUT_SIZE = len(FEATURES) * N_PROTOTYPES            # 32
HIDDEN = int(INPUT_SIZE * 1.5)                       # 48

SELU_ALPHA = 1.6732632423543772
SELU_SCALE = 1.0507009873554805
LN_EPS = 1e-5
NORM_EPS = 1e-12
BIG = 1e30
LANES = 128                                          # TPU vreg lane width
MAX_TB = 512                                         # batch-tile cap (rows)


# ------------------------------ helpers --------------------------------------
def _selu(x):
    # exp(x) - 1 (not expm1) so the kernel and the pure-JAX reference match bit-wise.
    return SELU_SCALE * jnp.where(x > 0, x, SELU_ALPHA * (jnp.exp(x) - 1.0))


def _layer_norm(v):
    """Row-wise layer norm over the last axis (biased var, eps=1e-5)."""
    m = jnp.mean(v, axis=-1, keepdims=True)
    var = jnp.mean((v - m) ** 2, axis=-1, keepdims=True)
    return (v - m) * lax.rsqrt(var + LN_EPS)


def _round_up(v, m):
    return ((v + m - 1) // m) * m


# ------------------------------ Pallas kernel --------------------------------
def shapelet_kernel(x_ref, pband_ref, ones_ref, consts_ref,
                    w1_ref, b1_ref, w2_ref, b2_ref, wo_ref, bo_ref,
                    out_ref, *, n_bags, nb_pad):
    """One batch tile: banded-prototype matmuls + roll-tree bag reductions + MLP."""
    x = x_ref[...].astype(jnp.float32)                              # (TB, L)

    dn = (((1,), (0,)), ((), ()))                                   # (TB,L)@(L,W)
    # ONE MXU matmul gives every (bag, prototype) inner product of this tile.
    G = lax.dot_general(x, pband_ref[...], dn,
                        preferred_element_type=jnp.float32)         # (TB, W)
    # Windowed sum of squares per bag (replicated per prototype lane), also MXU.
    x_sq = lax.dot_general(x * x, ones_ref[...], dn,
                           preferred_element_type=jnp.float32)      # (TB, W)

    consts = consts_ref[...]                                        # (8, W)
    p_norm = consts[0:1, :]        # ||p|| tiled per bag lane (0 on pad lanes)
    inv_p = consts[1:2, :]         # 1 / max(||p||, 1e-12)   (0 on pad lanes)
    min_mask = consts[2:3, :]      # +BIG on pad lanes, else 0
    cos_mask = consts[3:4, :]      # -BIG on pad lanes, else 0

    x_norm = jnp.sqrt(x_sq)
    # == 1 / max(||x_bag||, 1e-12); rsqrt on the EUP instead of a divide.
    inv_x = lax.rsqrt(jnp.maximum(x_sq, NORM_EPS * NORM_EPS))

    # "Distance" exactly as the PyTorch module: UN-squared norms, clamped at 0.
    dist = jnp.maximum(x_norm + p_norm - 2.0 * G, 0.0)              # pad lanes -> 0
    # Cosine similarity from the same Gram matrix (no second matmul).
    cos = G * inv_x * inv_p                                         # pad lanes -> 0

    # log2(nb_pad)-step roll tree along lanes (XLU) over bag-major groups of
    # N_PROTOTYPES lanes; lanes 0..NP-1 end up holding the full bag reduction.
    def bag_reduce(v, op):
        for k in range(int(math.log2(nb_pad))):
            v = op(v, pltpu.roll(v, shift=N_PROTOTYPES * (1 << k), axis=1))
        return v[:, :N_PROTOTYPES]                                  # (TB, NP)

    min_d = bag_reduce(dist + min_mask, jnp.minimum)
    max_d = bag_reduce(dist, jnp.maximum)                # pads are 0, dist >= 0
    mean_d = bag_reduce(dist, jnp.add) * (1.0 / n_bags)  # pads contribute 0
    max_c = bag_reduce(cos + cos_mask, jnp.maximum)

    feat = jnp.concatenate(
        [_layer_norm(min_d), _layer_norm(max_d),
         _layer_norm(mean_d), _layer_norm(max_c)], axis=-1)         # (TB, 32)

    # MLP: linear1 -> SELU -> (dropout=id) -> linear2 -> SELU -> (dropout=id) -> out.
    h1 = _selu(jnp.dot(feat, w1_ref[...],
                       preferred_element_type=jnp.float32) + b1_ref[...])
    h2 = _selu(jnp.dot(h1, w2_ref[...],
                       preferred_element_type=jnp.float32) + b2_ref[...])
    out = jnp.dot(h2, wo_ref[...],
                  preferred_element_type=jnp.float32) + bo_ref[...]  # (TB, 128)
    out_ref[...] = out.astype(out_ref.dtype)


# ------------------------------ wrapper ---------------------------------------
@jax.jit
def shapelet_forward(x, prototypes, w1, b1, w2, b2, wo, bo):
    B, L = x.shape
    NP, S = prototypes.shape
    assert NP == N_PROTOTYPES and S == BAG_SIZE
    n_bags = (L - BAG_SIZE) // STRIDE + 1
    # Pad the bag count so the lane width is a power-of-two multiple of 128.
    nb_pad = max(LANES // N_PROTOTYPES, pl.next_power_of_2(n_bags))
    W = nb_pad * N_PROTOTYPES
    assert n_bags <= nb_pad

    # --- tiny host/XLA-side precompute (once per call) ------------------------
    p32 = prototypes.astype(jnp.float32)
    p_band = jnp.zeros((L, W), jnp.float32)              # banded prototypes
    ones_rep = jnp.zeros((L, W), jnp.float32)            # banded window masks
    for n in range(n_bags):
        r, c = n * STRIDE, n * N_PROTOTYPES
        p_band = p_band.at[r:r + BAG_SIZE, c:c + N_PROTOTYPES].set(p32.T)
        ones_rep = ones_rep.at[r:r + BAG_SIZE, c:c + N_PROTOTYPES].set(1.0)

    valid = jnp.asarray((np.arange(W) // N_PROTOTYPES < n_bags).astype(np.float32))
    p_norm = jnp.sqrt(jnp.sum(p32 * p32, axis=1))                       # (NP,)
    consts = jnp.concatenate([
        (jnp.tile(p_norm, nb_pad) * valid)[None],                       # row 0
        (jnp.tile(1.0 / jnp.maximum(p_norm, NORM_EPS), nb_pad) * valid)[None],
        ((1.0 - valid) * BIG)[None],                                    # row 2
        ((valid - 1.0) * BIG)[None],                                    # row 3
        jnp.zeros((4, W), jnp.float32)], axis=0)                        # (8, W)

    # Lane-dense output: pad the 3-class head to 128 lanes (unmasked stores).
    wo_pad = jnp.zeros((HIDDEN, LANES), jnp.float32).at[:, :N_CLASSES].set(wo)
    bo_pad = jnp.zeros((1, LANES), jnp.float32).at[:, :N_CLASSES].set(bo)

    # --- batch tiling: large tiles, >=2 grid steps when possible (v7x 2 TCs) --
    b8 = _round_up(max(B, 8), 8)
    if b8 <= 8:
        steps, tb = 1, b8
    else:
        steps = max(2, pl.cdiv(b8, MAX_TB))
        tb = _round_up(pl.cdiv(b8, steps), 8)
    b_full = steps * tb
    x_pad = jnp.zeros((b_full, L), x.dtype).at[:B, :].set(x)

    def replicated(a):
        shp = a.shape
        return pl.BlockSpec(shp, lambda i: (0,) * len(shp))

    kernel = functools.partial(shapelet_kernel, n_bags=n_bags, nb_pad=nb_pad)
    out = pl.pallas_call(
        kernel,
        out_shape=jax.ShapeDtypeStruct((b_full, LANES), jnp.float32),
        grid=(steps,),
        in_specs=[
            pl.BlockSpec((tb, L), lambda i: (i, 0)),     # x: tiled over batch
            replicated(p_band), replicated(ones_rep), replicated(consts),
            replicated(w1), replicated(b1), replicated(w2), replicated(b2),
            replicated(wo_pad), replicated(bo_pad),
        ],
        out_specs=pl.BlockSpec((tb, LANES), lambda i: (i, 0)),
        compiler_params=pltpu.CompilerParams(
            dimension_semantics=("parallel",)),
    )(x_pad, p_band, ones_rep, consts, w1, b1, w2, b2, wo_pad, bo_pad)
    return out[:B, :N_CLASSES]


# -------------------------- pure-JAX reference --------------------------------
def convert_to_bags(x, bag_size, stride_ratio):
    """x: (B, L) -> (B, n_bags, bag_size) via sliding windows."""
    B, L = x.shape
    stride = max(1, int(bag_size * stride_ratio))
    n_bags = (L - bag_size) // stride + 1
    idx = jnp.arange(n_bags)[:, None] * stride + jnp.arange(bag_size)[None, :]
    return x[:, idx]


def reference_forward(x, prototypes, w1, b1, w2, b2, wo, bo):
    xb = convert_to_bags(x, BAG_SIZE, STRIDE_RATIO)
    P = prototypes

    def ln(v):
        m = jnp.mean(v, axis=-1, keepdims=True)
        var = jnp.mean((v - m) ** 2, axis=-1, keepdims=True)
        return (v - m) / jnp.sqrt(var + LN_EPS)

    x_norm = jnp.linalg.norm(xb, axis=2)[:, :, None]
    p_norm = jnp.linalg.norm(P, axis=1)[None, None, :]
    G = jnp.einsum("bns,ps->bnp", xb, P)
    dist = jnp.clip(x_norm + p_norm - 2.0 * G, 0.0, None)
    Xn = xb / jnp.maximum(jnp.linalg.norm(xb, axis=2, keepdims=True), NORM_EPS)
    Pn = P / jnp.maximum(jnp.linalg.norm(P, axis=1, keepdims=True), NORM_EPS)
    cos = jnp.einsum("bns,ps->bnp", Xn, Pn)
    feat = jnp.concatenate([
        ln(jnp.min(dist, axis=1)),
        ln(jnp.max(dist, axis=1)),
        ln(jnp.mean(dist, axis=1)),
        ln(jnp.max(cos, axis=1)),
    ], axis=1)
    h1 = _selu(feat @ w1 + b1)
    h2 = _selu(h1 @ w2 + b2)
    return h2 @ wo + bo


# --------------------------------- main ----------------------------------------
if __name__ == "__main__":
    key = jax.random.PRNGKey(0)
    kx, kp, k1, k2, k3, k4, k5, k6 = jax.random.split(key, 8)

    B, L = 30, 64                 # B not a multiple of 8 -> exercises the pad path

    def on_bf16_grid(a):
        # Round inputs to bf16-representable f32 so kernel<->reference agreement
        # does not depend on the MXU f32 precision mode of a given generation.
        return a.astype(jnp.bfloat16).astype(jnp.float32)

    x = on_bf16_grid(jax.random.normal(kx, (B, L), dtype=jnp.float32))

    # Parameters (deterministic, synthetic — shapes per the module __init__).
    prototypes = on_bf16_grid(
        0.5 * jax.random.normal(kp, (N_PROTOTYPES, BAG_SIZE), jnp.float32))
    w1 = on_bf16_grid(0.1 * jax.random.normal(k1, (INPUT_SIZE, HIDDEN), jnp.float32))
    b1 = on_bf16_grid(0.1 * jax.random.normal(k2, (1, HIDDEN), jnp.float32))
    w2 = on_bf16_grid(0.1 * jax.random.normal(k3, (HIDDEN, HIDDEN), jnp.float32))
    b2 = on_bf16_grid(0.1 * jax.random.normal(k4, (1, HIDDEN), jnp.float32))
    wo = on_bf16_grid(0.1 * jax.random.normal(k5, (HIDDEN, N_CLASSES), jnp.float32))
    bo = on_bf16_grid(0.1 * jax.random.normal(k6, (1, N_CLASSES), jnp.float32))

    out = jax.block_until_ready(
        shapelet_forward(x, prototypes, w1, b1, w2, b2, wo, bo))
    ref = reference_forward(x, prototypes, w1, b1, w2, b2, wo, bo)

    assert out.shape == (B, N_CLASSES)
    # Agreement is ~1e-5 when both paths do f32 matmuls; the extra slack only
    # covers a possible bf16-pass MXU precision mode in either path.
    assert jnp.allclose(out, ref, atol=2e-2, rtol=2e-2), (out, ref)

    print("KERNEL_OK")
</pallas_src>

<mosaic_0001>
module attributes {stable_mosaic.version = 11 : i64} {
  func.func @shapelet_kernel(%arg0: i32, %arg1: memref<16x64xf32, #tpu.memory_space<vmem>>, %arg2: memref<64x128xf32, #tpu.memory_space<vmem>>, %arg3: memref<64x128xf32, #tpu.memory_space<vmem>>, %arg4: memref<8x128xf32, #tpu.memory_space<vmem>>, %arg5: memref<32x48xf32, #tpu.memory_space<vmem>>, %arg6: memref<1x48xf32, #tpu.memory_space<vmem>>, %arg7: memref<48x48xf32, #tpu.memory_space<vmem>>, %arg8: memref<1x48xf32, #tpu.memory_space<vmem>>, %arg9: memref<48x128xf32, #tpu.memory_space<vmem>>, %arg10: memref<1x128xf32, #tpu.memory_space<vmem>>, %arg11: memref<16x128xf32, #tpu.memory_space<vmem>>) attributes {dimension_semantics = [#tpu.dimension_semantics<parallel>], iteration_bounds = array<i64: 2>, scalar_prefetch = 0 : i64, scratch_operands = 0 : i64, tpu.core_type = #tpu.core_type<tc>, window_params = [{transform_indices = @transform_0, window_bounds = array<i64: 16, 64>}, {pipeline_mode = #tpu.pipeline_mode<synchronous>, transform_indices = @transform_1, window_bounds = array<i64: 64, 128>}, {pipeline_mode = #tpu.pipeline_mode<synchronous>, transform_indices = @transform_2, window_bounds = array<i64: 64, 128>}, {pipeline_mode = #tpu.pipeline_mode<synchronous>, transform_indices = @transform_3, window_bounds = array<i64: 8, 128>}, {pipeline_mode = #tpu.pipeline_mode<synchronous>, transform_indices = @transform_4, window_bounds = array<i64: 32, 48>}, {pipeline_mode = #tpu.pipeline_mode<synchronous>, transform_indices = @transform_5, window_bounds = array<i64: 1, 48>}, {pipeline_mode = #tpu.pipeline_mode<synchronous>, transform_indices = @transform_6, window_bounds = array<i64: 48, 48>}, {pipeline_mode = #tpu.pipeline_mode<synchronous>, transform_indices = @transform_7, window_bounds = array<i64: 1, 48>}, {pipeline_mode = #tpu.pipeline_mode<synchronous>, transform_indices = @transform_8, window_bounds = array<i64: 48, 128>}, {pipeline_mode = #tpu.pipeline_mode<synchronous>, transform_indices = @transform_9, window_bounds = array<i64: 1, 128>}, {transform_indices = @transform_10, window_bounds = array<i64: 16, 128>}]} {
    %c0 = arith.constant 0 : index
    %c0_0 = arith.constant 0 : index
    %0 = vector.load %arg1[%c0, %c0_0] : memref<16x64xf32, #tpu.memory_space<vmem>>, vector<16x64xf32>
    %c0_1 = arith.constant 0 : index
    %c0_2 = arith.constant 0 : index
    %1 = vector.load %arg2[%c0_1, %c0_2] : memref<64x128xf32, #tpu.memory_space<vmem>>, vector<64x128xf32>
    %cst = arith.constant dense<0.000000e+00> : vector<16x128xf32>
    %2 = tpu.matmul %0, %1, %cst {dimension_numbers = #tpu.dot_dimension_numbers<[1], [0], [0], [1], [0, 0, 1, 1], [], []>} : vector<16x64xf32>, vector<64x128xf32>, vector<16x128xf32> -> vector<16x128xf32>
    %3 = arith.mulf %0, %0 : vector<16x64xf32>
    %c0_3 = arith.constant 0 : index
    %c0_4 = arith.constant 0 : index
    %4 = vector.load %arg3[%c0_3, %c0_4] : memref<64x128xf32, #tpu.memory_space<vmem>>, vector<64x128xf32>
    %cst_5 = arith.constant dense<0.000000e+00> : vector<16x128xf32>
    %5 = tpu.matmul %3, %4, %cst_5 {dimension_numbers = #tpu.dot_dimension_numbers<[1], [0], [0], [1], [0, 0, 1, 1], [], []>} : vector<16x64xf32>, vector<64x128xf32>, vector<16x128xf32> -> vector<16x128xf32>
    %c0_6 = arith.constant 0 : index
    %c0_7 = arith.constant 0 : index
    %6 = vector.load %arg4[%c0_6, %c0_7] : memref<8x128xf32, #tpu.memory_space<vmem>>, vector<8x128xf32>
    %7 = vector.extract_strided_slice %6 {offsets = [0, 0], sizes = [1, 128], strides = [1, 1]} : vector<8x128xf32> to vector<1x128xf32>
    %8 = vector.extract_strided_slice %6 {offsets = [1, 0], sizes = [1, 128], strides = [1, 1]} : vector<8x128xf32> to vector<1x128xf32>
    %9 = vector.extract_strided_slice %6 {offsets = [2, 0], sizes = [1, 128], strides = [1, 1]} : vector<8x128xf32> to vector<1x128xf32>
    %10 = vector.extract_strided_slice %6 {offsets = [3, 0], sizes = [1, 128], strides = [1, 1]} : vector<8x128xf32> to vector<1x128xf32>
    %11 = math.sqrt %5 : vector<16x128xf32>
    %cst_8 = arith.constant 1.000000e-24 : f32
    %12 = vector.broadcast %cst_8 : f32 to vector<16x128xf32>
    %13 = arith.maximumf %5, %12 : vector<16x128xf32>
    %14 = math.rsqrt %13 : vector<16x128xf32>
    %15 = vector.broadcast %7 : vector<1x128xf32> to vector<16x128xf32>
    %16 = arith.addf %11, %15 : vector<16x128xf32>
    %cst_9 = arith.constant 2.000000e+00 : f32
    %17 = vector.broadcast %cst_9 : f32 to vector<16x128xf32>
    %18 = arith.mulf %17, %2 : vector<16x128xf32>
    %19 = arith.subf %16, %18 : vector<16x128xf32>
    %cst_10 = arith.constant 0.000000e+00 : f32
    %20 = vector.broadcast %cst_10 : f32 to vector<16x128xf32>
    %21 = arith.maximumf %19, %20 : vector<16x128xf32>
    %22 = arith.mulf %2, %14 : vector<16x128xf32>
    %23 = vector.broadcast %8 : vector<1x128xf32> to vector<16x128xf32>
    %24 = arith.mulf %22, %23 : vector<16x128xf32>
    %25 = vector.broadcast %9 : vector<1x128xf32> to vector<16x128xf32>
    %26 = arith.addf %21, %25 : vector<16x128xf32>
    %c8_i32 = arith.constant 8 : i32
    %27 = tpu.dynamic_rotate %26 by %c8_i32 dim 1 : vector<16x128xf32>, i32 -> vector<16x128xf32>
    %28 = arith.minimumf %26, %27 : vector<16x128xf32>
    %c16_i32 = arith.constant 16 : i32
    %29 = tpu.dynamic_rotate %28 by %c16_i32 dim 1 : vector<16x128xf32>, i32 -> vector<16x128xf32>
    %30 = arith.minimumf %28, %29 : vector<16x128xf32>
    %c32_i32 = arith.constant 32 : i32
    %31 = tpu.dynamic_rotate %30 by %c32_i32 dim 1 : vector<16x128xf32>, i32 -> vector<16x128xf32>
    %32 = arith.minimumf %30, %31 : vector<16x128xf32>
    %c64_i32 = arith.constant 64 : i32
    %33 = tpu.dynamic_rotate %32 by %c64_i32 dim 1 : vector<16x128xf32>, i32 -> vector<16x128xf32>
    %34 = arith.minimumf %32, %33 : vector<16x128xf32>
    %35 = vector.extract_strided_slice %34 {offsets = [0, 0], sizes = [16, 8], strides = [1, 1]} : vector<16x128xf32> to vector<16x8xf32>
    %c8_i32_11 = arith.constant 8 : i32
    %36 = tpu.dynamic_rotate %21 by %c8_i32_11 dim 1 : vector<16x128xf32>, i32 -> vector<16x128xf32>
    %37 = arith.maximumf %21, %36 : vector<16x128xf32>
    %c16_i32_12 = arith.constant 16 : i32
    %38 = tpu.dynamic_rotate %37 by %c16_i32_12 dim 1 : vector<16x128xf32>, i32 -> vector<16x128xf32>
    %39 = arith.maximumf %37, %38 : vector<16x128xf32>
    %c32_i32_13 = arith.constant 32 : i32
    %40 = tpu.dynamic_rotate %39 by %c32_i32_13 dim 1 : vector<16x128xf32>, i32 -> vector<16x128xf32>
    %41 = arith.maximumf %39, %40 : vector<16x128xf32>
    %c64_i32_14 = arith.constant 64 : i32
    %42 = tpu.dynamic_rotate %41 by %c64_i32_14 dim 1 : vector<16x128xf32>, i32 -> vector<16x128xf32>
    %43 = arith.maximumf %41, %42 : vector<16x128xf32>
    %44 = vector.extract_strided_slice %43 {offsets = [0, 0], sizes = [16, 8], strides = [1, 1]} : vector<16x128xf32> to vector<16x8xf32>
    %c8_i32_15 = arith.constant 8 : i32
    %45 = tpu.dynamic_rotate %21 by %c8_i32_15 dim 1 : vector<16x128xf32>, i32 -> vector<16x128xf32>
    %46 = arith.addf %21, %45 : vector<16x128xf32>
    %c16_i32_16 = arith.constant 16 : i32
    %47 = tpu.dynamic_rotate %46 by %c16_i32_16 dim 1 : vector<16x128xf32>, i32 -> vector<16x128xf32>
    %48 = arith.addf %46, %47 : vector<16x128xf32>
    %c32_i32_17 = arith.constant 32 : i32
    %49 = tpu.dynamic_rotate %48 by %c32_i32_17 dim 1 : vector<16x128xf32>, i32 -> vector<16x128xf32>
    %50 = arith.addf %48, %49 : vector<16x128xf32>
    %c64_i32_18 = arith.constant 64 : i32
    %51 = tpu.dynamic_rotate %50 by %c64_i32_18 dim 1 : vector<16x128xf32>, i32 -> vector<16x128xf32>
    %52 = arith.addf %50, %51 : vector<16x128xf32>
    %53 = vector.extract_strided_slice %52 {offsets = [0, 0], sizes = [16, 8], strides = [1, 1]} : vector<16x128xf32> to vector<16x8xf32>
    %cst_19 = arith.constant 0.142857149 : f32
    %54 = vector.broadcast %cst_19 : f32 to vector<16x8xf32>
    %55 = arith.mulf %53, %54 : vector<16x8xf32>
    %56 = vector.broadcast %10 : vector<1x128xf32> to vector<16x128xf32>
    %57 = arith.addf %24, %56 : vector<16x128xf32>
    %c8_i32_20 = arith.constant 8 : i32
    %58 = tpu.dynamic_rotate %57 by %c8_i32_20 dim 1 : vector<16x128xf32>, i32 -> vector<16x128xf32>
    %59 = arith.maximumf %57, %58 : vector<16x128xf32>
    %c16_i32_21 = arith.constant 16 : i32
    %60 = tpu.dynamic_rotate %59 by %c16_i32_21 dim 1 : vector<16x128xf32>, i32 -> vector<16x128xf32>
    %61 = arith.maximumf %59, %60 : vector<16x128xf32>
    %c32_i32_22 = arith.constant 32 : i32
    %62 = tpu.dynamic_rotate %61 by %c32_i32_22 dim 1 : vector<16x128xf32>, i32 -> vector<16x128xf32>
    %63 = arith.maximumf %61, %62 : vector<16x128xf32>
    %c64_i32_23 = arith.constant 64 : i32
    %64 = tpu.dynamic_rotate %63 by %c64_i32_23 dim 1 : vector<16x128xf32>, i32 -> vector<16x128xf32>
    %65 = arith.maximumf %63, %64 : vector<16x128xf32>
    %66 = vector.extract_strided_slice %65 {offsets = [0, 0], sizes = [16, 8], strides = [1, 1]} : vector<16x128xf32> to vector<16x8xf32>
    %cst_24 = arith.constant dense<0.000000e+00> : vector<16xf32>
    %67 = vector.multi_reduction <add>, %35, %cst_24 [1] : vector<16x8xf32> to vector<16xf32>
    %68 = vector.shape_cast %67 : vector<16xf32> to vector<16x1xf32>
    %cst_25 = arith.constant 8.000000e+00 : f32
    %69 = vector.broadcast %cst_25 : f32 to vector<16x1xf32>
    %70 = arith.divf %68, %69 : vector<16x1xf32>
    %71 = vector.broadcast %70 : vector<16x1xf32> to vector<16x8xf32>
    %72 = arith.subf %35, %71 : vector<16x8xf32>
    %73 = arith.mulf %72, %72 : vector<16x8xf32>
    %cst_26 = arith.constant dense<0.000000e+00> : vector<16xf32>
    %74 = vector.multi_reduction <add>, %73, %cst_26 [1] : vector<16x8xf32> to vector<16xf32>
    %75 = vector.shape_cast %74 : vector<16xf32> to vector<16x1xf32>
    %cst_27 = arith.constant 8.000000e+00 : f32
    %76 = vector.broadcast %cst_27 : f32 to vector<16x1xf32>
    %77 = arith.divf %75, %76 : vector<16x1xf32>
    %78 = vector.broadcast %70 : vector<16x1xf32> to vector<16x8xf32>
    %79 = arith.subf %35, %78 : vector<16x8xf32>
    %cst_28 = arith.constant 9.99999974E-6 : f32
    %80 = vector.broadcast %cst_28 : f32 to vector<16x1xf32>
    %81 = arith.addf %77, %80 : vector<16x1xf32>
    %82 = math.rsqrt %81 : vector<16x1xf32>
    %83 = vector.broadcast %82 : vector<16x1xf32> to vector<16x8xf32>
    %84 = arith.mulf %79, %83 : vector<16x8xf32>
    %cst_29 = arith.constant dense<0.000000e+00> : vector<16xf32>
    %85 = vector.multi_reduction <add>, %44, %cst_29 [1] : vector<16x8xf32> to vector<16xf32>
    %86 = vector.shape_cast %85 : vector<16xf32> to vector<16x1xf32>
    %cst_30 = arith.constant 8.000000e+00 : f32
    %87 = vector.broadcast %cst_30 : f32 to vector<16x1xf32>
    %88 = arith.divf %86, %87 : vector<16x1xf32>
    %89 = vector.broadcast %88 : vector<16x1xf32> to vector<16x8xf32>
    %90 = arith.subf %44, %89 : vector<16x8xf32>
    %91 = arith.mulf %90, %90 : vector<16x8xf32>
    %cst_31 = arith.constant dense<0.000000e+00> : vector<16xf32>
    %92 = vector.multi_reduction <add>, %91, %cst_31 [1] : vector<16x8xf32> to vector<16xf32>
    %93 = vector.shape_cast %92 : vector<16xf32> to vector<16x1xf32>
    %cst_32 = arith.constant 8.000000e+00 : f32
    %94 = vector.broadcast %cst_32 : f32 to vector<16x1xf32>
    %95 = arith.divf %93, %94 : vector<16x1xf32>
    %96 = vector.broadcast %88 : vector<16x1xf32> to vector<16x8xf32>
    %97 = arith.subf %44, %96 : vector<16x8xf32>
    %cst_33 = arith.constant 9.99999974E-6 : f32
    %98 = vector.broadcast %cst_33 : f32 to vector<16x1xf32>
    %99 = arith.addf %95, %98 : vector<16x1xf32>
    %100 = math.rsqrt %99 : vector<16x1xf32>
    %101 = vector.broadcast %100 : vector<16x1xf32> to vector<16x8xf32>
    %102 = arith.mulf %97, %101 : vector<16x8xf32>
    %cst_34 = arith.constant dense<0.000000e+00> : vector<16xf32>
    %103 = vector.multi_reduction <add>, %55, %cst_34 [1] : vector<16x8xf32> to vector<16xf32>
    %104 = vector.shape_cast %103 : vector<16xf32> to vector<16x1xf32>
    %cst_35 = arith.constant 8.000000e+00 : f32
    %105 = vector.broadcast %cst_35 : f32 to vector<16x1xf32>
    %106 = arith.divf %104, %105 : vector<16x1xf32>
    %107 = vector.broadcast %106 : vector<16x1xf32> to vector<16x8xf32>
    %108 = arith.subf %55, %107 : vector<16x8xf32>
    %109 = arith.mulf %108, %108 : vector<16x8xf32>
    %cst_36 = arith.constant dense<0.000000e+00> : vector<16xf32>
    %110 = vector.multi_reduction <add>, %109, %cst_36 [1] : vector<16x8xf32> to vector<16xf32>
    %111 = vector.shape_cast %110 : vector<16xf32> to vector<16x1xf32>
    %cst_37 = arith.constant 8.000000e+00 : f32
    %112 = vector.broadcast %cst_37 : f32 to vector<16x1xf32>
    %113 = arith.divf %111, %112 : vector<16x1xf32>
    %114 = vector.broadcast %106 : vector<16x1xf32> to vector<16x8xf32>
    %115 = arith.subf %55, %114 : vector<16x8xf32>
    %cst_38 = arith.constant 9.99999974E-6 : f32
    %116 = vector.broadcast %cst_38 : f32 to vector<16x1xf32>
    %117 = arith.addf %113, %116 : vector<16x1xf32>
    %118 = math.rsqrt %117 : vector<16x1xf32>
    %119 = vector.broadcast %118 : vector<16x1xf32> to vector<16x8xf32>
    %120 = arith.mulf %115, %119 : vector<16x8xf32>
    %cst_39 = arith.constant dense<0.000000e+00> : vector<16xf32>
    %121 = vector.multi_reduction <add>, %66, %cst_39 [1] : vector<16x8xf32> to vector<16xf32>
    %122 = vector.shape_cast %121 : vector<16xf32> to vector<16x1xf32>
    %cst_40 = arith.constant 8.000000e+00 : f32
    %123 = vector.broadcast %cst_40 : f32 to vector<16x1xf32>
    %124 = arith.divf %122, %123 : vector<16x1xf32>
    %125 = vector.broadcast %124 : vector<16x1xf32> to vector<16x8xf32>
    %126 = arith.subf %66, %125 : vector<16x8xf32>
    %127 = arith.mulf %126, %126 : vector<16x8xf32>
    %cst_41 = arith.constant dense<0.000000e+00> : vector<16xf32>
    %128 = vector.multi_reduction <add>, %127, %cst_41 [1] : vector<16x8xf32> to vector<16xf32>
    %129 = vector.shape_cast %128 : vector<16xf32> to vector<16x1xf32>
    %cst_42 = arith.constant 8.000000e+00 : f32
    %130 = vector.broadcast %cst_42 : f32 to vector<16x1xf32>
    %131 = arith.divf %129, %130 : vector<16x1xf32>
    %132 = vector.broadcast %124 : vector<16x1xf32> to vector<16x8xf32>
    %133 = arith.subf %66, %132 : vector<16x8xf32>
    %cst_43 = arith.constant 9.99999974E-6 : f32
    %134 = vector.broadcast %cst_43 : f32 to vector<16x1xf32>
    %135 = arith.addf %131, %134 : vector<16x1xf32>
    %136 = math.rsqrt %135 : vector<16x1xf32>
    %137 = vector.broadcast %136 : vector<16x1xf32> to vector<16x8xf32>
    %138 = arith.mulf %133, %137 : vector<16x8xf32>
    %139 = tpu.concatenate %84, %102, %120, %138 in 1 : vector<16x8xf32>, vector<16x8xf32>, vector<16x8xf32>, vector<16x8xf32> -> vector<16x32xf32>
    %c0_44 = arith.constant 0 : index
    %c0_45 = arith.constant 0 : index
    %140 = vector.load %arg5[%c0_44, %c0_45] : memref<32x48xf32, #tpu.memory_space<vmem>>, vector<32x48xf32>
    %cst_46 = arith.constant dense<0.000000e+00> : vector<16x48xf32>
    %141 = tpu.matmul %139, %140, %cst_46 {dimension_numbers = #tpu.dot_dimension_numbers<[1], [0], [0], [1], [0, 0, 1, 1], [], []>} : vector<16x32xf32>, vector<32x48xf32>, vector<16x48xf32> -> vector<16x48xf32>
    %c0_47 = arith.constant 0 : index
    %c0_48 = arith.constant 0 : index
    %142 = vector.load %arg6[%c0_47, %c0_48] : memref<1x48xf32, #tpu.memory_space<vmem>>, vector<1x48xf32>
    %143 = vector.broadcast %142 : vector<1x48xf32> to vector<16x48xf32>
    %144 = arith.addf %141, %143 : vector<16x48xf32>
    %cst_49 = arith.constant 0.000000e+00 : f32
    %145 = vector.broadcast %cst_49 : f32 to vector<16x48xf32>
    %146 = arith.cmpf ogt, %144, %145 : vector<16x48xf32>
    %147 = math.exp %144 : vector<16x48xf32>
    %cst_50 = arith.constant 1.000000e+00 : f32
    %148 = vector.broadcast %cst_50 : f32 to vector<16x48xf32>
    %149 = arith.subf %147, %148 : vector<16x48xf32>
    %cst_51 = arith.constant 1.67326319 : f32
    %150 = vector.broadcast %cst_51 : f32 to vector<16x48xf32>
    %151 = arith.mulf %150, %149 : vector<16x48xf32>
    %152 = arith.select %146, %144, %151 : vector<16x48xi1>, vector<16x48xf32>
    %cst_52 = arith.constant 1.05070102 : f32
    %153 = vector.broadcast %cst_52 : f32 to vector<16x48xf32>
    %154 = arith.mulf %153, %152 : vector<16x48xf32>
    %c0_53 = arith.constant 0 : index
    %c0_54 = arith.constant 0 : index
    %155 = vector.load %arg7[%c0_53, %c0_54] : memref<48x48xf32, #tpu.memory_space<vmem>>, vector<48x48xf32>
    %cst_55 = arith.constant dense<0.000000e+00> : vector<16x48xf32>
    %156 = tpu.matmul %154, %155, %cst_55 {dimension_numbers = #tpu.dot_dimension_numbers<[1], [0], [0], [1], [0, 0, 1, 1], [], []>} : vector<16x48xf32>, vector<48x48xf32>, vector<16x48xf32> -> vector<16x48xf32>
    %c0_56 = arith.constant 0 : index
    %c0_57 = arith.constant 0 : index
    %157 = vector.load %arg8[%c0_56, %c0_57] : memref<1x48xf32, #tpu.memory_space<vmem>>, vector<1x48xf32>
    %158 = vector.broadcast %157 : vector<1x48xf32> to vector<16x48xf32>
    %159 = arith.addf %156, %158 : vector<16x48xf32>
    %cst_58 = arith.constant 0.000000e+00 : f32
    %160 = vector.broadcast %cst_58 : f32 to vector<16x48xf32>
    %161 = arith.cmpf ogt, %159, %160 : vector<16x48xf32>
    %162 = math.exp %159 : vector<16x48xf32>
    %cst_59 = arith.constant 1.000000e+00 : f32
    %163 = vector.broadcast %cst_59 : f32 to vector<16x48xf32>
    %164 = arith.subf %162, %163 : vector<16x48xf32>
    %cst_60 = arith.constant 1.67326319 : f32
    %165 = vector.broadcast %cst_60 : f32 to vector<16x48xf32>
    %166 = arith.mulf %165, %164 : vector<16x48xf32>
    %167 = arith.select %161, %159, %166 : vector<16x48xi1>, vector<16x48xf32>
    %cst_61 = arith.constant 1.05070102 : f32
    %168 = vector.broadcast %cst_61 : f32 to vector<16x48xf32>
    %169 = arith.mulf %168, %167 : vector<16x48xf32>
    %c0_62 = arith.constant 0 : index
    %c0_63 = arith.constant 0 : index
    %170 = vector.load %arg9[%c0_62, %c0_63] : memref<48x128xf32, #tpu.memory_space<vmem>>, vector<48x128xf32>
    %cst_64 = arith.constant dense<0.000000e+00> : vector<16x128xf32>
    %171 = tpu.matmul %169, %170, %cst_64 {dimension_numbers = #tpu.dot_dimension_numbers<[1], [0], [0], [1], [0, 0, 1, 1], [], []>} : vector<16x48xf32>, vector<48x128xf32>, vector<16x128xf32> -> vector<16x128xf32>
    %c0_65 = arith.constant 0 : index
    %c0_66 = arith.constant 0 : index
    %172 = vector.load %arg10[%c0_65, %c0_66] : memref<1x128xf32, #tpu.memory_space<vmem>>, vector<1x128xf32>
    %173 = vector.broadcast %172 : vector<1x128xf32> to vector<16x128xf32>
    %174 = arith.addf %171, %173 : vector<16x128xf32>
    %c0_67 = arith.constant 0 : index
    %c0_68 = arith.constant 0 : index
    %175 = vector.load %arg11[%c0_67, %c0_68] : memref<16x128xf32, #tpu.memory_space<vmem>>, vector<16x128xf32>
    tpu.vector_store %arg11[%c0_67, %c0_68], %174 {strides = array<i32>} : memref<16x128xf32, #tpu.memory_space<vmem>>, vector<16x128xf32>,
    return
  }
  func.func @transform_0(%arg0: i32) -> (i32, i32) {
    %c0_i32 = arith.constant 0 : i32
    %c0_i32_0 = arith.constant 0 : i32
    return %arg0, %c0_i32 : i32, i32
  }
  func.func @transform_1(%arg0: i32) -> (i32, i32) {
    %c0_i32 = arith.constant 0 : i32
    %c0_i32_0 = arith.constant 0 : i32
    %c0_i32_1 = arith.constant 0 : i32
    return %c0_i32, %c0_i32_0 : i32, i32
  }
  func.func @transform_2(%arg0: i32) -> (i32, i32) {
    %c0_i32 = arith.constant 0 : i32
    %c0_i32_0 = arith.constant 0 : i32
    %c0_i32_1 = arith.constant 0 : i32
    return %c0_i32, %c0_i32_0 : i32, i32
  }
  func.func @transform_3(%arg0: i32) -> (i32, i32) {
    %c0_i32 = arith.constant 0 : i32
    %c0_i32_0 = arith.constant 0 : i32
    %c0_i32_1 = arith.constant 0 : i32
    return %c0_i32, %c0_i32_0 : i32, i32
  }
  func.func @transform_4(%arg0: i32) -> (i32, i32) {
    %c0_i32 = arith.constant 0 : i32
    %c0_i32_0 = arith.constant 0 : i32
    %c0_i32_1 = arith.constant 0 : i32
    return %c0_i32, %c0_i32_0 : i32, i32
  }
  func.func @transform_5(%arg0: i32) -> (i32, i32) {
    %c0_i32 = arith.constant 0 : i32
    %c0_i32_0 = arith.constant 0 : i32
    %c0_i32_1 = arith.constant 0 : i32
    return %c0_i32, %c0_i32_0 : i32, i32
  }
  func.func @transform_6(%arg0: i32) -> (i32, i32) {
    %c0_i32 = arith.constant 0 : i32
    %c0_i32_0 = arith.constant 0 : i32
    %c0_i32_1 = arith.constant 0 : i32
    return %c0_i32, %c0_i32_0 : i32, i32
  }
  func.func @transform_7(%arg0: i32) -> (i32, i32) {
    %c0_i32 = arith.constant 0 : i32
    %c0_i32_0 = arith.constant 0 : i32
    %c0_i32_1 = arith.constant 0 : i32
    return %c0_i32, %c0_i32_0 : i32, i32
  }
  func.func @transform_8(%arg0: i32) -> (i32, i32) {
    %c0_i32 = arith.constant 0 : i32
    %c0_i32_0 = arith.constant 0 : i32
    %c0_i32_1 = arith.constant 0 : i32
    return %c0_i32, %c0_i32_0 : i32, i32
  }
  func.func @transform_9(%arg0: i32) -> (i32, i32) {
    %c0_i32 = arith.constant 0 : i32
    %c0_i32_0 = arith.constant 0 : i32
    %c0_i32_1 = arith.constant 0 : i32
    return %c0_i32, %c0_i32_0 : i32, i32
  }
  func.func @transform_10(%arg0: i32) -> (i32, i32) {
    %c0_i32 = arith.constant 0 : i32
    %c0_i32_0 = arith.constant 0 : i32
    return %arg0, %c0_i32 : i32, i32
  }
}

</mosaic_0001>

<llo_original>
// kernel: shapelet_forward.1
$region0: #{shapelet_forward.1}
  #allocation0 [shape = 'u32[]', space=smem, size = 0x4, offset = 0x4, fixed_abs, tag = 'smem constant byte address 0x4 - core index']
  #allocation1 [shape = 'u32[144,128]{1,0:T(1,128)}', space=vmem, size = 0x12000, scoped, tag = 'internal scratch']
  %s0 = inlined_call_operand.vmem [shape: f32[32,64], index: 0, kind: input, shape index: {}]
  %s1 = inlined_call_operand.vmem [shape: f32[64,128], index: 1, kind: input, shape index: {}]
  %s2 = inlined_call_operand.vmem [shape: f32[64,128], index: 2, kind: input, shape index: {}]
  %s3 = inlined_call_operand.vmem [shape: f32[8,128], index: 3, kind: input, shape index: {}]
  %s4 = inlined_call_operand.vmem [shape: f32[32,48], index: 4, kind: input, shape index: {}]
  %s5 = inlined_call_operand.vmem [shape: f32[1,48], index: 5, kind: input, shape index: {}]
  %s6 = inlined_call_operand.vmem [shape: f32[48,48], index: 6, kind: input, shape index: {}]
  %s7 = inlined_call_operand.vmem [shape: f32[1,48], index: 7, kind: input, shape index: {}]
  %s8 = inlined_call_operand.vmem [shape: f32[48,128], index: 8, kind: input, shape index: {}]
  %s9 = inlined_call_operand.vmem [shape: f32[1,128], index: 9, kind: input, shape index: {}]
  %s10 = inlined_call_operand.vmem [shape: f32[32,128], index: 10, kind: output, shape index: {}]
  %s11 = sld [smem:[#allocation0]]
  $region73: #{shapelet_forward.1} parent=0
    _
  %s13 = ssub.s32 1, %s11
  %s14 = scalar_select 0, %s13, %s11
  loop: start=0, step=1, limit=4
  $region2: #{shapelet_forward.1} parent=0 // loop_pre_header
    _
  $region3: #{shapelet_forward.1} parent=0 // loop_header
    %s16 = sphi 0, %s20
    %p17 = scmp.ge.s32.totalorder %s16, 4
    %s26 = sphi 0, %s28
    %s29 = sphi 0, %s26
    %s30 = sphi 0, %s29
    %s46 = sphi 0, %s30
    %s50 = sphi 0, %s50
    %s52 = sphi 0, %s50
    %s53 = sphi 0, %s52
    %s67 = sphi 0, %s53
    %s71 = sphi 0, %s71
    %s73 = sphi 0, %s71
    %s74 = sphi 0, %s73
    %s88 = sphi 0, %s74
    %s92 = sphi 0, %s92
    %s94 = sphi 0, %s92
    %s95 = sphi 0, %s94
    %s109 = sphi 0, %s95
    %s113 = sphi 0, %s113
    %s115 = sphi 0, %s113
    %s116 = sphi 0, %s115
    %s130 = sphi 0, %s116
    %s134 = sphi 0, %s134
    %s136 = sphi 0, %s134
    %s137 = sphi 0, %s136
    %s151 = sphi 0, %s137
    %s155 = sphi 0, %s155
    %s157 = sphi 0, %s155
    %s158 = sphi 0, %s157
    %s172 = sphi 0, %s158
    %s176 = sphi 0, %s176
    %s178 = sphi 0, %s176
    %s179 = sphi 0, %s178
    %s193 = sphi 0, %s179
    %s197 = sphi 0, %s197
    %s199 = sphi 0, %s197
    %s200 = sphi 0, %s199
    %s214 = sphi 0, %s200
    %s218 = sphi 0, %s218
    %s220 = sphi 0, %s218
    %s221 = sphi 0, %s220
    %s235 = sphi 0, %s221
    %s241 = sphi 0, %s243
    %s244 = sphi 0, %s241
    %s245 = sphi 0, %s244
    %s261 = sphi 0, %s245
  $region4: #{shapelet_forward.1} parent=0 // loop_header_branch
    %19 = sbr.rel (%p17) target = $region8
  $region5: #{shapelet_forward.1} parent=0 // loop_body
    %s21 = ssub.s32 %s16, 1
    %s22 = ssub.s32 %s16, 2
    %s23 = sadd.s32 %s16, 1
    %s24 = ssub.s32 %s16, %s23
    %p25 = scmp.eq.s32.totalorder %s24, 0
    %s27 = sadd.s32 %s26, 1
    %s28 = scalar_select %p25, %s26, %s27
    %p31 = pneg %p25
    %p32 = scmp.eq.s32.totalorder %s16, 1
    %p33 = por %p31, %p32
    %p34 = scmp.ne.s32.totalorder %s26, %s29
    %p35 = scmp.eq.s32.totalorder %s16, 0
    %p36 = por %p34, %p35
    %p37 = scmp.ne.s32.totalorder %s26, %s29
    %p38 = scmp.eq.s32.totalorder %s21, 1
    %p39 = por %p37, %p38
    %p40 = scmp.ne.s32.totalorder %s29, %s30
    %p41 = scmp.eq.s32.totalorder %s21, 0
    %p42 = por %p40, %p41
    %p43 = scmp.ne.s32.totalorder %s29, %s30
    %p44 = scmp.eq.s32.totalorder %s22, 1
    %p45 = por %p43, %p44
    %p47 = scmp.ne.s32.totalorder %s30, %s46
    %p48 = scmp.eq.s32.totalorder %s22, 0
    %p49 = por %p47, %p48
    %s51 = sadd.s32 %s50, 1
    %p54 = scmp.eq.s32.totalorder %s16, 1
    %p55 = scmp.ne.s32.totalorder %s50, %s52
    %p56 = scmp.eq.s32.totalorder %s16, 0
    %p57 = por %p55, %p56
    %p58 = scmp.ne.s32.totalorder %s50, %s52
    %p59 = scmp.eq.s32.totalorder %s21, 1
    %p60 = por %p58, %p59
    %p61 = scmp.ne.s32.totalorder %s52, %s53
    %p62 = scmp.eq.s32.totalorder %s21, 0
    %p63 = por %p61, %p62
    %p64 = scmp.ne.s32.totalorder %s52, %s53
    %p65 = scmp.eq.s32.totalorder %s22, 1
    %p66 = por %p64, %p65
    %p68 = scmp.ne.s32.totalorder %s53, %s67
    %p69 = scmp.eq.s32.totalorder %s22, 0
    %p70 = por %p68, %p69
    %s72 = sadd.s32 %s71, 1
    %p75 = scmp.eq.s32.totalorder %s16, 1
    %p76 = scmp.ne.s32.totalorder %s71, %s73
    %p77 = scmp.eq.s32.totalorder %s16, 0
    %p78 = por %p76, %p77
    %p79 = scmp.ne.s32.totalorder %s71, %s73
    %p80 = scmp.eq.s32.totalorder %s21, 1
    %p81 = por %p79, %p80
    %p82 = scmp.ne.s32.totalorder %s73, %s74
    %p83 = scmp.eq.s32.totalorder %s21, 0
    %p84 = por %p82, %p83
    %p85 = scmp.ne.s32.totalorder %s73, %s74
    %p86 = scmp.eq.s32.totalorder %s22, 1
    %p87 = por %p85, %p86
    %p89 = scmp.ne.s32.totalorder %s74, %s88
    %p90 = scmp.eq.s32.totalorder %s22, 0
    %p91 = por %p89, %p90
    %s93 = sadd.s32 %s92, 1
    %p96 = scmp.eq.s32.totalorder %s16, 1
    %p97 = scmp.ne.s32.totalorder %s92, %s94
    %p98 = scmp.eq.s32.totalorder %s16, 0
    %p99 = por %p97, %p98
    %p100 = scmp.ne.s32.totalorder %s92, %s94
    %p101 = scmp.eq.s32.totalorder %s21, 1
    %p102 = por %p100, %p101
    %p103 = scmp.ne.s32.totalorder %s94, %s95
    %p104 = scmp.eq.s32.totalorder %s21, 0
    %p105 = por %p103, %p104
    %p106 = scmp.ne.s32.totalorder %s94, %s95
    %p107 = scmp.eq.s32.totalorder %s22, 1
    %p108 = por %p106, %p107
    %p110 = scmp.ne.s32.totalorder %s95, %s109
    %p111 = scmp.eq.s32.totalorder %s22, 0
    %p112 = por %p110, %p111
    %s114 = sadd.s32 %s113, 1
    %p117 = scmp.eq.s32.totalorder %s16, 1
    %p118 = scmp.ne.s32.totalorder %s113, %s115
    %p119 = scmp.eq.s32.totalorder %s16, 0
    %p120 = por %p118, %p119
    %p121 = scmp.ne.s32.totalorder %s113, %s115
    %p122 = scmp.eq.s32.totalorder %s21, 1
    %p123 = por %p121, %p122
    %p124 = scmp.ne.s32.totalorder %s115, %s116
    %p125 = scmp.eq.s32.totalorder %s21, 0
    %p126 = por %p124, %p125
    %p127 = scmp.ne.s32.totalorder %s115, %s116
    %p128 = scmp.eq.s32.totalorder %s22, 1
    %p129 = por %p127, %p128
    %p131 = scmp.ne.s32.totalorder %s116, %s130
    %p132 = scmp.eq.s32.totalorder %s22, 0
    %p133 = por %p131, %p132
    %s135 = sadd.s32 %s134, 1
    %p138 = scmp.eq.s32.totalorder %s16, 1
    %p139 = scmp.ne.s32.totalorder %s134, %s136
    %p140 = scmp.eq.s32.totalorder %s16, 0
    %p141 = por %p139, %p140
    %p142 = scmp.ne.s32.totalorder %s134, %s136
    %p143 = scmp.eq.s32.totalorder %s21, 1
    %p144 = por %p142, %p143
    %p145 = scmp.ne.s32.totalorder %s136, %s137
    %p146 = scmp.eq.s32.totalorder %s21, 0
    %p147 = por %p145, %p146
    %p148 = scmp.ne.s32.totalorder %s136, %s137
    %p149 = scmp.eq.s32.totalorder %s22, 1
    %p150 = por %p148, %p149
    %p152 = scmp.ne.s32.totalorder %s137, %s151
    %p153 = scmp.eq.s32.totalorder %s22, 0
    %p154 = por %p152, %p153
    %s156 = sadd.s32 %s155, 1
    %p159 = scmp.eq.s32.totalorder %s16, 1
    %p160 = scmp.ne.s32.totalorder %s155, %s157
    %p161 = scmp.eq.s32.totalorder %s16, 0
    %p162 = por %p160, %p161
    %p163 = scmp.ne.s32.totalorder %s155, %s157
    %p164 = scmp.eq.s32.totalorder %s21, 1
    %p165 = por %p163, %p164
    %p166 = scmp.ne.s32.totalorder %s157, %s158
    %p167 = scmp.eq.s32.totalorder %s21, 0
    %p168 = por %p166, %p167
    %p169 = scmp.ne.s32.totalorder %s157, %s158
    %p170 = scmp.eq.s32.totalorder %s22, 1
    %p171 = por %p169, %p170
    %p173 = scmp.ne.s32.totalorder %s158, %s172
    %p174 = scmp.eq.s32.totalorder %s22, 0
    %p175 = por %p173, %p174
    %s177 = sadd.s32 %s176, 1
    %p180 = scmp.eq.s32.totalorder %s16, 1
    %p181 = scmp.ne.s32.totalorder %s176, %s178
    %p182 = scmp.eq.s32.totalorder %s16, 0
    %p183 = por %p181, %p182
    %p184 = scmp.ne.s32.totalorder %s176, %s178
    %p185 = scmp.eq.s32.totalorder %s21, 1
    %p186 = por %p184, %p185
    %p187 = scmp.ne.s32.totalorder %s178, %s179
    %p188 = scmp.eq.s32.totalorder %s21, 0
    %p189 = por %p187, %p188
    %p190 = scmp.ne.s32.totalorder %s178, %s179
    %p191 = scmp.eq.s32.totalorder %s22, 1
    %p192 = por %p190, %p191
    %p194 = scmp.ne.s32.totalorder %s179, %s193
    %p195 = scmp.eq.s32.totalorder %s22, 0
    %p196 = por %p194, %p195
    %s198 = sadd.s32 %s197, 1
    %p201 = scmp.eq.s32.totalorder %s16, 1
    %p202 = scmp.ne.s32.totalorder %s197, %s199
    %p203 = scmp.eq.s32.totalorder %s16, 0
    %p204 = por %p202, %p203
    %p205 = scmp.ne.s32.totalorder %s197, %s199
    %p206 = scmp.eq.s32.totalorder %s21, 1
    %p207 = por %p205, %p206
    %p208 = scmp.ne.s32.totalorder %s199, %s200
    %p209 = scmp.eq.s32.totalorder %s21, 0
    %p210 = por %p208, %p209
    %p211 = scmp.ne.s32.totalorder %s199, %s200
    %p212 = scmp.eq.s32.totalorder %s22, 1
    %p213 = por %p211, %p212
    %p215 = scmp.ne.s32.totalorder %s200, %s214
    %p216 = scmp.eq.s32.totalorder %s22, 0
    %p217 = por %p215, %p216
    %s219 = sadd.s32 %s218, 1
    %p222 = scmp.eq.s32.totalorder %s16, 1
    %p223 = scmp.ne.s32.totalorder %s218, %s220
    %p224 = scmp.eq.s32.totalorder %s16, 0
    %p225 = por %p223, %p224
    %p226 = scmp.ne.s32.totalorder %s218, %s220
    %p227 = scmp.eq.s32.totalorder %s21, 1
    %p228 = por %p226, %p227
    %p229 = scmp.ne.s32.totalorder %s220, %s221
    %p230 = scmp.eq.s32.totalorder %s21, 0
    %p231 = por %p229, %p230
    %p232 = scmp.ne.s32.totalorder %s220, %s221
    %p233 = scmp.eq.s32.totalorder %s22, 1
    %p234 = por %p232, %p233
    %p236 = scmp.ne.s32.totalorder %s221, %s235
    %p237 = scmp.eq.s32.totalorder %s22, 0
    %p238 = por %p236, %p237
    %s239 = ssub.s32 %s16, %s23
    %p240 = scmp.eq.s32.totalorder %s239, 0
    %s242 = sadd.s32 %s241, 1
    %s243 = scalar_select %p240, %s241, %s242
    %p246 = pneg %p240
    %p247 = scmp.eq.s32.totalorder %s16, 1
    %p248 = por %p246, %p247
    %p249 = scmp.ne.s32.totalorder %s241, %s244
    %p250 = scmp.eq.s32.totalorder %s16, 0
    %p251 = por %p249, %p250
    %p252 = scmp.ne.s32.totalorder %s241, %s244
    %p253 = scmp.eq.s32.totalorder %s21, 1
    %p254 = por %p252, %p253
    %p255 = scmp.ne.s32.totalorder %s244, %s245
    %p256 = scmp.eq.s32.totalorder %s21, 0
    %p257 = por %p255, %p256
    %p258 = scmp.ne.s32.totalorder %s244, %s245
    %p259 = scmp.eq.s32.totalorder %s22, 1
    %p260 = por %p258, %p259
    %p262 = scmp.ne.s32.totalorder %s245, %s261
    %p263 = scmp.eq.s32.totalorder %s22, 0
    %p264 = por %p262, %p263
    %p265 = scmp.le.s32.totalorder 1, %s16
    %p266 = scmp.lt.s32.totalorder %s16, 3
    %p267 = pnand %p265, %p266
    %p268 = pneg %p267
    // Predicated region
    $region9: #{shapelet_forward.1} parent=5 // pred_check
      _
    $region10: #{shapelet_forward.1} parent=5 // pred_check_branch
      %270 = sbr.rel (%p267) target = $region12
    $region11: #{shapelet_forward.1} parent=5 // pred_region
      %s271 = ssub.s32 %s16, 1
      // Predicated region
      $region13: #{shapelet_forward.1} parent=11 // pred_check
        %p272 = pneg %p63
      $region14: #{shapelet_forward.1} parent=11 // pred_check_branch
        %274 = sbr.rel (%p272) target = $region16
      $region15: #{shapelet_forward.1} parent=11 // pred_region
        _
      $region16: #{shapelet_forward.1} parent=11 // pred_fallthru
        _
      // Predicated region
      $region17: #{shapelet_forward.1} parent=11 // pred_check
        %p275 = pneg %p84
      $region18: #{shapelet_forward.1} parent=11 // pred_check_branch
        %277 = sbr.rel (%p275) target = $region20
      $region19: #{shapelet_forward.1} parent=11 // pred_region
        _
      $region20: #{shapelet_forward.1} parent=11 // pred_fallthru
        _
      // Predicated region
      $region21: #{shapelet_forward.1} parent=11 // pred_check
        %p278 = pneg %p105
      $region22: #{shapelet_forward.1} parent=11 // pred_check_branch
        %280 = sbr.rel (%p278) target = $region24
      $region23: #{shapelet_forward.1} parent=11 // pred_region
        _
      $region24: #{shapelet_forward.1} parent=11 // pred_fallthru
        _
      // Predicated region
      $region25: #{shapelet_forward.1} parent=11 // pred_check
        %p281 = pneg %p126
      $region26: #{shapelet_forward.1} parent=11 // pred_check_branch
        %283 = sbr.rel (%p281) target = $region28
      $region27: #{shapelet_forward.1} parent=11 // pred_region
        _
      $region28: #{shapelet_forward.1} parent=11 // pred_fallthru
        _
      // Predicated region
      $region29: #{shapelet_forward.1} parent=11 // pred_check
        %p284 = pneg %p147
      $region30: #{shapelet_forward.1} parent=11 // pred_check_branch
        %286 = sbr.rel (%p284) target = $region32
      $region31: #{shapelet_forward.1} parent=11 // pred_region
        _
      $region32: #{shapelet_forward.1} parent=11 // pred_fallthru
        _
      // Predicated region
      $region33: #{shapelet_forward.1} parent=11 // pred_check
        %p287 = pneg %p168
      $region34: #{shapelet_forward.1} parent=11 // pred_check_branch
        %289 = sbr.rel (%p287) target = $region36
      $region35: #{shapelet_forward.1} parent=11 // pred_region
        _
      $region36: #{shapelet_forward.1} parent=11 // pred_fallthru
        _
      // Predicated region
      $region37: #{shapelet_forward.1} parent=11 // pred_check
        %p290 = pneg %p189
      $region38: #{shapelet_forward.1} parent=11 // pred_check_branch
        %292 = sbr.rel (%p290) target = $region40
      $region39: #{shapelet_forward.1} parent=11 // pred_region
        _
      $region40: #{shapelet_forward.1} parent=11 // pred_fallthru
        _
      // Predicated region
      $region41: #{shapelet_forward.1} parent=11 // pred_check
        %p293 = pneg %p210
      $region42: #{shapelet_forward.1} parent=11 // pred_check_branch
        %295 = sbr.rel (%p293) target = $region44
      $region43: #{shapelet_forward.1} parent=11 // pred_region
        _
      $region44: #{shapelet_forward.1} parent=11 // pred_fallthru
        _
      // Predicated region
      $region45: #{shapelet_forward.1} parent=11 // pred_check
        %p296 = pneg %p231
      $region46: #{shapelet_forward.1} parent=11 // pred_check_branch
        %298 = sbr.rel (%p296) target = $region48
      $region47: #{shapelet_forward.1} parent=11 // pred_region
        _
      $region48: #{shapelet_forward.1} parent=11 // pred_fallthru
        _
    $region12: #{shapelet_forward.1} parent=5 // pred_fallthru
      _
    %p299 = scmp.lt.s32.totalorder %s16, 2
    // Predicated region
    $region49: #{shapelet_forward.1} parent=5 // pred_check
      %p300 = pneg %p299
    $region50: #{shapelet_forward.1} parent=5 // pred_check_branch
      %302 = sbr.rel (%p300) target = $region52
    $region51: #{shapelet_forward.1} parent=5 // pred_region
      // Predicated region
      $region53: #{shapelet_forward.1} parent=51 // pred_check
        %p303 = pneg %p36
      $region54: #{shapelet_forward.1} parent=51 // pred_check_branch
        %305 = sbr.rel (%p303) target = $region56
      $region55: #{shapelet_forward.1} parent=51 // pred_region
        %s306 = smul.u32 2, %s16
        %p307 = scmp.lt.s32.totalorder %s306, 3
        %s308 = scalar_select %p307, %s306, 3
        %s309 = smul.addr %s308, 8
        %s310 = scalar_lea.vmem %s0, %s309
        %s311 = smul.u32 2, %s16
      $region56: #{shapelet_forward.1} parent=51 // pred_fallthru
        _
    $region52: #{shapelet_forward.1} parent=5 // pred_fallthru
      _
    %p312 = scmp.le.s32.totalorder 1, %s16
    %p313 = scmp.lt.s32.totalorder %s16, 3
    %p314 = pnand %p312, %p313
    %p315 = pneg %p314
    // Predicated region
    $region57: #{shapelet_forward.1} parent=5 // pred_check
      _
    $region58: #{shapelet_forward.1} parent=5 // pred_check_branch
      %317 = sbr.rel (%p314) target = $region60
    $region59: #{shapelet_forward.1} parent=5 // pred_region
      %s318 = ssub.s32 %s16, 1
      %s319 = smul.u32 2, %s21
      %p320 = scmp.lt.s32.totalorder %s319, 3
      %s321 = scalar_select %p320, %s319, 3
      %s322 = smul.addr %s321, 8
      %s323 = scalar_lea.vmem %s0, %s322
      %p324 = pneg %p42
      %p325 = pneg %p39
      %p326 = pneg %p63
      %p327 = pneg %p60
      %p328 = pneg %p84
      %p329 = pneg %p81
      %p330 = pneg %p105
      %p331 = pneg %p102
      %p332 = pneg %p126
      %p333 = pneg %p123
      %p334 = pneg %p147
      %p335 = pneg %p144
      %p336 = pneg %p168
      %p337 = pneg %p165
      %p338 = pneg %p189
      %p339 = pneg %p186
      %p340 = pneg %p210
      %p341 = pneg %p207
      %p342 = pneg %p231
      %p343 = pneg %p228
      %p344 = pneg %p257
      %p345 = pneg %p254
      %s346 = smul.u32 2, %s21
      %p347 = scmp.lt.s32.totalorder %s346, 3
      %s348 = scalar_select %p347, %s346, 3
      %s349 = smul.addr %s348, 8
      %s350 = scalar_lea.vmem %s10, %s349
      %s351 = smul.u32 2, %s21
      %p352 = scmp.lt.s32.totalorder %s351, 3
      %s353 = scalar_select %p352, %s351, 3
      %s354 = smul.addr %s353, 8
      %s355 = scalar_lea.vmem %s0, %s354
      %s356 = smul.u32 2, %s21
      %s357 = smul.u32 2, %s21
      %p358 = scmp.lt.s32.totalorder %s357, 3
      %s359 = scalar_select %p358, %s357, 3
      %s360 = smul.addr %s359, 8
      %s361 = scalar_lea.vmem %s10, %s360
      %s362 = smul.u32 2, %s21
      %v363 = vld [vmem:[%s355] sm:$0xff]
      %v364 = vld [vmem:[%s355 + $0x8] sm:$0xff]
      %v365 = vld [vmem:[%s1] sm:$0xff]
      %v366 = vld [vmem:[%s1 + $0x8] sm:$0xff]
      %v367 = vld [vmem:[%s1 + $0x10] sm:$0xff]
      %v368 = vld [vmem:[%s1 + $0x18] sm:$0xff]
      %v369 = vld [vmem:[%s1 + $0x20] sm:$0xff]
      %v370 = vld [vmem:[%s1 + $0x28] sm:$0xff]
      %v371 = vld [vmem:[%s1 + $0x30] sm:$0xff]
      %v372 = vld [vmem:[%s1 + $0x38] sm:$0xff]
      %vm373 = vcmask 523264
      %v375 = vsel %vm373, %v363, 0
      %v378 = vsel %vm373, %v364, 0
      %380 = vmatprep.subr.mxu0 0.0
      %381 = vmatpush1.msra.mxu0 %v365
      %382 = vmatprep.subr.mxu0 0.0
      %383 = vmatpush1.msra.mxu0 %v366
      %384 = vmatprep.subr.mxu0 0.0
      %385 = vmatpush1.msra.mxu0 %v367
      %386 = vmatprep.subr.mxu0 0.0
      %387 = vmatpush1.msra.mxu0 %v368
      %388 = vmatprep.subr.mxu0 0.0
      %389 = vmatpush1.msra.mxu0 %v369
      %390 = vmatprep.subr.mxu0 0.0
      %391 = vmatpush1.msra.mxu0 %v370
      %392 = vmatprep.subr.mxu0 0.0
      %393 = vmatpush1.msra.mxu0 %v371
      %394 = vmatprep.subr.mxu0 0.0
      %395 = vmatpush1.msra.mxu0 %v372
      %396 = vmatprep.subr.mxu0 0.0
      %397 = vmatpush1.msra.mxu0 0.0
      %398 = vmatprep.subr.mxu0 0.0
      %399 = vmatpush1.msra.mxu0 0.0
      %400 = vmatprep.subr.mxu0 0.0
      %401 = vmatpush1.msra.mxu0 0.0
      %402 = vmatprep.subr.mxu0 0.0
      %403 = vmatpush1.msra.mxu0 0.0
      %404 = vmatprep.subr.mxu0 0.0
      %405 = vmatpush1.msra.mxu0 0.0
      %406 = vmatprep.subr.mxu0 0.0
      %407 = vmatpush1.msra.mxu0 0.0
      %408 = vmatprep.subr.mxu0 0.0
      %409 = vmatpush1.msra.mxu0 0.0
      %410 = vmatprep.subr.mxu0 0.0
      %411 = vmatpush1.msra.mxu0 0.0
      %412 = vmatprep.subr.mxu0 0.0
      %413 = vmatpush1.msra.mxu0 0.0
      %414 = vmatprep.subr.mxu0 0.0
      %415 = vmatpush1.msra.mxu0 0.0
      %416 = vmatprep.subr.mxu0 0.0
      %417 = vmatpush1.msra.mxu0 0.0
      %418 = vmatprep.subr.mxu0 0.0
      %419 = vmatpush1.msra.mxu0 0.0
      %420 = vmatprep.subr.mxu0 0.0
      %421 = vmatpush1.msra.mxu0 0.0
      %422 = vmatprep.subr.mxu0 0.0
      %423 = vmatpush1.msra.mxu0 0.0
      %424 = vmatprep.subr.mxu0 0.0
      %425 = vmatpush1.msra.mxu0 0.0
      %426 = vmatprep.subr.mxu0 0.0
      %427 = vmatpush1.msra.mxu0 0.0
      %428 = vmatprep.subr.mxu0 0.0
      %429 = vmatpush1.msra.mxu0 0.0
      %430 = vmatprep.subr.mxu0 0.0
      %431 = vmatpush1.msra.mxu0 0.0
      %432 = vmatprep.subr.mxu0 0.0
      %433 = vmatpush1.msra.mxu0 0.0
      %434 = vmatprep.subr.mxu0 0.0
      %435 = vmatpush1.msra.mxu0 0.0
      %436 = vmatprep.subr.mxu0 0.0
      %437 = vmatpush1.msra.mxu0 0.0
      %438 = vmatprep.subr.mxu0 0.0
      %439 = vmatpush1.msra.mxu0 0.0
      %440 = vmatprep.subr.mxu0 0.0
      %441 = vmatpush1.msra.mxu0 0.0
      %442 = vmatprep.subr.mxu0 0.0
      %443 = vmatpush1.msra.mxu0 0.0
      %444 = vmatprep.mubr.f32.mxu0 0.0
      %445 = vmatmul.mubr.f32.gmra.mrb[0].mxu0 %v375
      %v446 = vpop.f32.mrb[0].mxu0
      %v447 = vadd.f32 0.0, %v446
      %v448 = vpop.f32.mrb[0].mxu0
      %449 = vmatprep.mubr.f32.mxu0 0.0
      %450 = vmatmul.mubr.f32.gmra.mrb[0].mxu0 %v378
      %v451 = vpop.f32.mrb[0].mxu0
      %v452 = vadd.f32 0.0, %v451
      %v453 = vpop.f32.mrb[0].mxu0
      %454 = vdwg.mxu0
      %v455 = vmul.f32 %v363, %v363
      %v456 = vmul.f32 %v364, %v364
      %v457 = vld [vmem:[%s2] sm:$0xff]
      %v458 = vld [vmem:[%s2 + $0x8] sm:$0xff]
      %v459 = vld [vmem:[%s2 + $0x10] sm:$0xff]
      %v460 = vld [vmem:[%s2 + $0x18] sm:$0xff]
      %v461 = vld [vmem:[%s2 + $0x20] sm:$0xff]
      %v462 = vld [vmem:[%s2 + $0x28] sm:$0xff]
      %v463 = vld [vmem:[%s2 + $0x30] sm:$0xff]
      %v464 = vld [vmem:[%s2 + $0x38] sm:$0xff]
      %v466 = vsel %vm373, %v455, 0
      %v469 = vsel %vm373, %v456, 0
      %471 = vmatprep.subr.mxu0 0.0
      %472 = vmatpush1.msra.mxu0 %v457
      %473 = vmatprep.subr.mxu0 0.0
      %474 = vmatpush1.msra.mxu0 %v458
      %475 = vmatprep.subr.mxu0 0.0
      %476 = vmatpush1.msra.mxu0 %v459
      %477 = vmatprep.subr.mxu0 0.0
      %478 = vmatpush1.msra.mxu0 %v460
      %479 = vmatprep.subr.mxu0 0.0
      %480 = vmatpush1.msra.mxu0 %v461
      %481 = vmatprep.subr.mxu0 0.0
      %482 = vmatpush1.msra.mxu0 %v462
      %483 = vmatprep.subr.mxu0 0.0
      %484 = vmatpush1.msra.mxu0 %v463
      %485 = vmatprep.subr.mxu0 0.0
      %486 = vmatpush1.msra.mxu0 %v464
      %487 = vmatprep.subr.mxu0 0.0
      %488 = vmatpush1.msra.mxu0 0.0
      %489 = vmatprep.subr.mxu0 0.0
      %490 = vmatpush1.msra.mxu0 0.0
      %491 = vmatprep.subr.mxu0 0.0
      %492 = vmatpush1.msra.mxu0 0.0
      %493 = vmatprep.subr.mxu0 0.0
      %494 = vmatpush1.msra.mxu0 0.0
      %495 = vmatprep.subr.mxu0 0.0
      %496 = vmatpush1.msra.mxu0 0.0
      %497 = vmatprep.subr.mxu0 0.0
      %498 = vmatpush1.msra.mxu0 0.0
      %499 = vmatprep.subr.mxu0 0.0
      %500 = vmatpush1.msra.mxu0 0.0
      %501 = vmatprep.subr.mxu0 0.0
      %502 = vmatpush1.msra.mxu0 0.0
      %503 = vmatprep.subr.mxu0 0.0
      %504 = vmatpush1.msra.mxu0 0.0
      %505 = vmatprep.subr.mxu0 0.0
      %506 = vmatpush1.msra.mxu0 0.0
      %507 = vmatprep.subr.mxu0 0.0
      %508 = vmatpush1.msra.mxu0 0.0
      %509 = vmatprep.subr.mxu0 0.0
      %510 = vmatpush1.msra.mxu0 0.0
      %511 = vmatprep.subr.mxu0 0.0
      %512 = vmatpush1.msra.mxu0 0.0
      %513 = vmatprep.subr.mxu0 0.0
      %514 = vmatpush1.msra.mxu0 0.0
      %515 = vmatprep.subr.mxu0 0.0
      %516 = vmatpush1.msra.mxu0 0.0
      %517 = vmatprep.subr.mxu0 0.0
      %518 = vmatpush1.msra.mxu0 0.0
      %519 = vmatprep.subr.mxu0 0.0
      %520 = vmatpush1.msra.mxu0 0.0
      %521 = vmatprep.subr.mxu0 0.0
      %522 = vmatpush1.msra.mxu0 0.0
      %523 = vmatprep.subr.mxu0 0.0
      %524 = vmatpush1.msra.mxu0 0.0
      %525 = vmatprep.subr.mxu0 0.0
      %526 = vmatpush1.msra.mxu0 0.0
      %527 = vmatprep.subr.mxu0 0.0
      %528 = vmatpush1.msra.mxu0 0.0
      %529 = vmatprep.subr.mxu0 0.0
      %530 = vmatpush1.msra.mxu0 0.0
      %531 = vmatprep.subr.mxu0 0.0
      %532 = vmatpush1.msra.mxu0 0.0
      %533 = vmatprep.subr.mxu0 0.0
      %534 = vmatpush1.msra.mxu0 0.0
      %535 = vmatprep.mubr.f32.mxu0 0.0
      %536 = vmatmul.mubr.f32.gmra.mrb[0].mxu0 %v466
      %v537 = vpop.f32.mrb[0].mxu0
      %v538 = vadd.f32 0.0, %v537
      %v539 = vpop.f32.mrb[0].mxu0
      %540 = vmatprep.mubr.f32.mxu0 0.0
      %541 = vmatmul.mubr.f32.gmra.mrb[0].mxu0 %v469
      %v542 = vpop.f32.mrb[0].mxu0
      %v543 = vadd.f32 0.0, %v542
      %v544 = vpop.f32.mrb[0].mxu0
      %545 = vdwg.mxu0
      %v546 = vld [vmem:[%s3] sm:$0xff]
      %v547 = vrsqrt.pop %v538
      %v548 = vmul.f32 %v538, %v547
      %vm549 = vcmp.eq.f32.partialorder %v538, inf
      %v550 = vsel %vm549, %v538, %v548
      %vm551 = vcmp.eq.f32.partialorder %v538, 0.0
      %v552 = vand.u32 %v538, 2147483648
      %v553 = vsel %vm551, %v552, %v550
      %v554 = vrsqrt.pop %v543
      %v555 = vmul.f32 %v543, %v554
      %vm556 = vcmp.eq.f32.partialorder %v543, inf
      %v557 = vsel %vm556, %v543, %v555
      %vm558 = vcmp.eq.f32.partialorder %v543, 0.0
      %v559 = vand.u32 %v543, 2147483648
      %v560 = vsel %vm558, %v559, %v557
      %v561 = vmax.f32 %v538, 1e-24
      %v562 = vmax.f32 %v543, 1e-24
      %v563 = vrsqrt.pop %v561
      %v564 = vrsqrt.pop %v562
      %v565 = vlaneseq
      %v566 = vshrl.u32 %v565, 7
      %v567 = vsub.s32 0, %v566
      %v568 = vrot.slane %v546, %v567
      %v569 = vadd.f32 %v553, %v568
      %v570 = vadd.f32 %v560, %v568
      %v571 = vmul.f32 %v447, 2.0
      %v572 = vmul.f32 %v452, 2.0
      %v573 = vsub.f32 %v569, %v571
      %v574 = vsub.f32 %v570, %v572
      %v575 = vmax.f32 %v573, 0.0
      %v576 = vmax.f32 %v574, 0.0
      %v577 = vmul.f32 %v447, %v563
      %v578 = vmul.f32 %v452, %v564
      %v579 = vlaneseq
      %v580 = vshrl.u32 %v579, 7
      %v581 = vsub.s32 1, %v580
      %v582 = vrot.slane %v546, %v581
      %v583 = vmul.f32 %v577, %v582
      %v584 = vmul.f32 %v578, %v582
      %v585 = vlaneseq
      %v586 = vshrl.u32 %v585, 7
      %v587 = vsub.s32 2, %v586
      %v588 = vrot.slane %v546, %v587
      %v589 = vadd.f32 %v575, %v588
      %v590 = vadd.f32 %v576, %v588
      %591 = vrot.lane.b32.xlu0 %v589, 8
      %v592 = vpop.permute.xlu0 %591
      %593 = vrot.lane.b32.xlu0 %v590, 8
      %v594 = vpop.permute.xlu0 %593
      %v595 = vmin.f32 %v589, %v592
      %v596 = vmin.f32 %v590, %v594
      %597 = vrot.lane.b32.xlu0 %v595, 16
      %v598 = vpop.permute.xlu0 %597
      %599 = vrot.lane.b32.xlu0 %v596, 16
      %v600 = vpop.permute.xlu0 %599
      %v601 = vmin.f32 %v595, %v598
      %v602 = vmin.f32 %v596, %v600
      %603 = vrot.lane.b32.xlu0 %v601, 32
      %v604 = vpop.permute.xlu0 %603
      %605 = vrot.lane.b32.xlu0 %v602, 32
      %v606 = vpop.permute.xlu0 %605
      %v607 = vmin.f32 %v601, %v604
      %v608 = vmin.f32 %v602, %v606
      %609 = vrot.lane.b32.xlu0 %v607, 64
      %v610 = vpop.permute.xlu0 %609
      %611 = vrot.lane.b32.xlu0 %v608, 64
      %v612 = vpop.permute.xlu0 %611
      %v613 = vmin.f32 %v607, %v610
      %v614 = vmin.f32 %v608, %v612
      %615 = vrot.lane.b32.xlu0 %v575, 8
      %v616 = vpop.permute.xlu0 %615
      %617 = vrot.lane.b32.xlu0 %v576, 8
      %v618 = vpop.permute.xlu0 %617
      %v619 = vmax.f32 %v575, %v616
      %v620 = vmax.f32 %v576, %v618
      %621 = vrot.lane.b32.xlu0 %v619, 16
      %v622 = vpop.permute.xlu0 %621
      %623 = vrot.lane.b32.xlu0 %v620, 16
      %v624 = vpop.permute.xlu0 %623
      %v625 = vmax.f32 %v619, %v622
      %v626 = vmax.f32 %v620, %v624
      %627 = vrot.lane.b32.xlu0 %v625, 32
      %v628 = vpop.permute.xlu0 %627
      %629 = vrot.lane.b32.xlu0 %v626, 32
      %v630 = vpop.permute.xlu0 %629
      %v631 = vmax.f32 %v625, %v628
      %v632 = vmax.f32 %v626, %v630
      %633 = vrot.lane.b32.xlu0 %v631, 64
      %v634 = vpop.permute.xlu0 %633
      %635 = vrot.lane.b32.xlu0 %v632, 64
      %v636 = vpop.permute.xlu0 %635
      %v637 = vmax.f32 %v631, %v634
      %v638 = vmax.f32 %v632, %v636
      %v639 = vadd.f32 %v575, %v616
      %v640 = vadd.f32 %v576, %v618
      %641 = vrot.lane.b32.xlu0 %v639, 16
      %v642 = vpop.permute.xlu0 %641
      %643 = vrot.lane.b32.xlu0 %v640, 16
      %v644 = vpop.permute.xlu0 %643
      %v645 = vadd.f32 %v639, %v642
      %v646 = vadd.f32 %v640, %v644
      %647 = vrot.lane.b32.xlu0 %v645, 32
      %v648 = vpop.permute.xlu0 %647
      %649 = vrot.lane.b32.xlu0 %v646, 32
      %v650 = vpop.permute.xlu0 %649
      %v651 = vadd.f32 %v645, %v648
      %v652 = vadd.f32 %v646, %v650
      %653 = vrot.lane.b32.xlu0 %v651, 64
      %v654 = vpop.permute.xlu0 %653
      %655 = vrot.lane.b32.xlu0 %v652, 64
      %v656 = vpop.permute.xlu0 %655
      %v657 = vadd.f32 %v651, %v654
      %v658 = vadd.f32 %v652, %v656
      %v659 = vmul.f32 %v657, 0.14285715
      %v660 = vmul.f32 %v658, 0.14285715
      %v661 = vlaneseq
      %v662 = vshrl.u32 %v661, 7
      %v663 = vsub.s32 3, %v662
      %v664 = vrot.slane %v546, %v663
      %v665 = vadd.f32 %v583, %v664
      %v666 = vadd.f32 %v584, %v664
      %667 = vrot.lane.b32.xlu0 %v665, 8
      %v668 = vpop.permute.xlu0 %667
      %669 = vrot.lane.b32.xlu0 %v666, 8
      %v670 = vpop.permute.xlu0 %669
      %v671 = vmax.f32 %v665, %v668
      %v672 = vmax.f32 %v666, %v670
      %673 = vrot.lane.b32.xlu0 %v671, 16
      %v674 = vpop.permute.xlu0 %673
      %675 = vrot.lane.b32.xlu0 %v672, 16
      %v676 = vpop.permute.xlu0 %675
      %v677 = vmax.f32 %v671, %v674
      %v678 = vmax.f32 %v672, %v676
      %679 = vrot.lane.b32.xlu0 %v677, 32
      %v680 = vpop.permute.xlu0 %679
      %681 = vrot.lane.b32.xlu0 %v678, 32
      %v682 = vpop.permute.xlu0 %681
      %v683 = vmax.f32 %v677, %v680
      %v684 = vmax.f32 %v678, %v682
      %685 = vrot.lane.b32.xlu0 %v683, 64
      %v686 = vpop.permute.xlu0 %685
      %687 = vrot.lane.b32.xlu0 %v684, 64
      %v688 = vpop.permute.xlu0 %687
      %v689 = vmax.f32 %v683, %v686
      %v690 = vmax.f32 %v684, %v688
      %vm691 = vcmask 64512
      %v692 = vsel %vm691, %v613, 0.0
      %693 = vadd.xlane.f32.xlu0 %v692
      %v694 = vpop.xlane.xlu0 %693
      %v695 = vsel %vm691, %v614, 0.0
      %696 = vadd.xlane.f32.xlu0 %v695
      %v697 = vpop.xlane.xlu0 %696
      %v698 = vrcp.pop 8.0
      %v699 = vmul.f32 %v694, %v698
      %v700 = vmul.f32 %v697, %v698
      %v701 = vsub.f32 %v613, %v699
      %v702 = vsub.f32 %v614, %v700
      %v703 = vmul.f32 %v701, %v701
      %v704 = vmul.f32 %v702, %v702
      %v705 = vsel %vm691, %v703, 0.0
      %706 = vadd.xlane.f32.xlu0 %v705
      %v707 = vpop.xlane.xlu0 %706
      %v708 = vsel %vm691, %v704, 0.0
      %709 = vadd.xlane.f32.xlu0 %v708
      %v710 = vpop.xlane.xlu0 %709
      %v711 = vmul.f32 %v707, %v698
      %v712 = vmul.f32 %v710, %v698
      %v713 = vadd.f32 %v711, 1e-05
      %v714 = vadd.f32 %v712, 1e-05
      %v715 = vrsqrt.pop %v713
      %v716 = vrsqrt.pop %v714
      %v717 = vmul.f32 %v701, %v715
      %v718 = vmul.f32 %v702, %v716
      %v719 = vsel %vm691, %v637, 0.0
      %720 = vadd.xlane.f32.xlu0 %v719
      %v721 = vpop.xlane.xlu0 %720
      %v722 = vsel %vm691, %v638, 0.0
      %723 = vadd.xlane.f32.xlu0 %v722
      %v724 = vpop.xlane.xlu0 %723
      %v725 = vmul.f32 %v721, %v698
      %v726 = vmul.f32 %v724, %v698
      %v727 = vsub.f32 %v637, %v725
      %v728 = vsub.f32 %v638, %v726
      %v729 = vmul.f32 %v727, %v727
      %v730 = vmul.f32 %v728, %v728
      %v731 = vsel %vm691, %v729, 0.0
      %732 = vadd.xlane.f32.xlu0 %v731
      %v733 = vpop.xlane.xlu0 %732
      %v734 = vsel %vm691, %v730, 0.0
      %735 = vadd.xlane.f32.xlu0 %v734
      %v736 = vpop.xlane.xlu0 %735
      %v737 = vmul.f32 %v733, %v698
      %v738 = vmul.f32 %v736, %v698
      %v739 = vadd.f32 %v737, 1e-05
      %v740 = vadd.f32 %v738, 1e-05
      %v741 = vrsqrt.pop %v739
      %v742 = vrsqrt.pop %v740
      %v743 = vmul.f32 %v727, %v741
      %v744 = vmul.f32 %v728, %v742
      %v745 = vsel %vm691, %v659, 0.0
      %746 = vadd.xlane.f32.xlu0 %v745
      %v747 = vpop.xlane.xlu0 %746
      %v748 = vsel %vm691, %v660, 0.0
      %749 = vadd.xlane.f32.xlu0 %v748
      %v750 = vpop.xlane.xlu0 %749
      %v751 = vmul.f32 %v747, %v698
      %v752 = vmul.f32 %v750, %v698
      %v753 = vsub.f32 %v659, %v751
      %v754 = vsub.f32 %v660, %v752
      %v755 = vmul.f32 %v753, %v753
      %v756 = vmul.f32 %v754, %v754
      %v757 = vsel %vm691, %v755, 0.0
      %758 = vadd.xlane.f32.xlu0 %v757
      %v759 = vpop.xlane.xlu0 %758
      %v760 = vsel %vm691, %v756, 0.0
      %761 = vadd.xlane.f32.xlu0 %v760
      %v762 = vpop.xlane.xlu0 %761
      %v763 = vmul.f32 %v759, %v698
      %v764 = vmul.f32 %v762, %v698
      %v765 = vadd.f32 %v763, 1e-05
      %v766 = vadd.f32 %v764, 1e-05
      %v767 = vrsqrt.pop %v765
      %v768 = vrsqrt.pop %v766
      %v769 = vmul.f32 %v753, %v767
      %v770 = vmul.f32 %v754, %v768
      %v771 = vsel %vm691, %v689, 0.0
      %772 = vadd.xlane.f32.xlu0 %v771
      %v773 = vpop.xlane.xlu0 %772
      %v774 = vsel %vm691, %v690, 0.0
      %775 = vadd.xlane.f32.xlu0 %v774
      %v776 = vpop.xlane.xlu0 %775
      %v777 = vmul.f32 %v773, %v698
      %v778 = vmul.f32 %v776, %v698
      %v779 = vsub.f32 %v689, %v777
      %v780 = vsub.f32 %v690, %v778
      %v781 = vmul.f32 %v779, %v779
      %v782 = vmul.f32 %v780, %v780
      %v783 = vsel %vm691, %v781, 0.0
      %784 = vadd.xlane.f32.xlu0 %v783
      %v785 = vpop.xlane.xlu0 %784
      %v786 = vsel %vm691, %v782, 0.0
      %787 = vadd.xlane.f32.xlu0 %v786
      %v788 = vpop.xlane.xlu0 %787
      %v789 = vmul.f32 %v785, %v698
      %v790 = vmul.f32 %v788, %v698
      %v791 = vadd.f32 %v789, 1e-05
      %v792 = vadd.f32 %v790, 1e-05
      %v793 = vrsqrt.pop %v791
      %v794 = vrsqrt.pop %v792
      %v795 = vmul.f32 %v779, %v793
      %v796 = vmul.f32 %v780, %v794
      %799 = vrot.lane.b32.xlu0 %v743, 8
      %v800 = vpop.permute.xlu0 %799
      %801 = vrot.lane.b32.xlu0 %v744, 8
      %v802 = vpop.permute.xlu0 %801
      %807 = vrot.lane.b32.xlu0 %v769, 16
      %v808 = vpop.permute.xlu0 %807
      %809 = vrot.lane.b32.xlu0 %v770, 16
      %v810 = vpop.permute.xlu0 %809
      %815 = vrot.lane.b32.xlu0 %v795, 24
      %v816 = vpop.permute.xlu0 %815
      %817 = vrot.lane.b32.xlu0 %v796, 24
      %v818 = vpop.permute.xlu0 %817
      %v821 = vsel %vm691, %v717, %v800
      %v822 = vsel %vm691, %v718, %v802
      %vm823 = vcmask 130048
      %v824 = vsel %vm823, %v821, %v808
      %v825 = vsel %vm823, %v822, %v810
      %vm826 = vcmask 195584
      %v827 = vsel %vm826, %v824, %v816
      %v828 = vsel %vm826, %v825, %v818
      %v829 = vld [vmem:[%s4] sm:$0xff]
      %v830 = vld [vmem:[%s4 + $0x8] sm:$0xff]
      %v831 = vld [vmem:[%s4 + $0x10] sm:$0xff]
      %v832 = vld [vmem:[%s4 + $0x18] sm:$0xff]
      %v833 = vld [vmem:[%s5] sm:$0x1]
      %v835 = vlaneseq
      %v836 = vshrl.u32 %v835, 7
      %v837 = vsub.s32 0, %v836
      %v838 = vrot.slane %v833, %v837
      %vm840 = vcmask 261120
      %v842 = vsel %vm840, %v827, 0
      %v845 = vsel %vm840, %v828, 0
      %847 = vmatprep.subr.mxu0 0.0
      %848 = vmatpush1.msra.mxu0 %v829
      %849 = vmatprep.subr.mxu0 0.0
      %850 = vmatpush1.msra.mxu0 %v830
      %851 = vmatprep.subr.mxu0 0.0
      %852 = vmatpush1.msra.mxu0 %v831
      %853 = vmatprep.subr.mxu0 0.0
      %854 = vmatpush1.msra.mxu0 %v832
      %855 = vmatprep.subr.mxu0 0.0
      %856 = vmatpush1.msra.mxu0 0.0
      %857 = vmatprep.subr.mxu0 0.0
      %858 = vmatpush1.msra.mxu0 0.0
      %859 = vmatprep.subr.mxu0 0.0
      %860 = vmatpush1.msra.mxu0 0.0
      %861 = vmatprep.subr.mxu0 0.0
      %862 = vmatpush1.msra.mxu0 0.0
      %863 = vmatprep.subr.mxu0 0.0
      %864 = vmatpush1.msra.mxu0 0.0
      %865 = vmatprep.subr.mxu0 0.0
      %866 = vmatpush1.msra.mxu0 0.0
      %867 = vmatprep.subr.mxu0 0.0
      %868 = vmatpush1.msra.mxu0 0.0
      %869 = vmatprep.subr.mxu0 0.0
      %870 = vmatpush1.msra.mxu0 0.0
      %871 = vmatprep.subr.mxu0 0.0
      %872 = vmatpush1.msra.mxu0 0.0
      %873 = vmatprep.subr.mxu0 0.0
      %874 = vmatpush1.msra.mxu0 0.0
      %875 = vmatprep.subr.mxu0 0.0
      %876 = vmatpush1.msra.mxu0 0.0
      %877 = vmatprep.subr.mxu0 0.0
      %878 = vmatpush1.msra.mxu0 0.0
      %879 = vmatprep.subr.mxu0 0.0
      %880 = vmatpush1.msra.mxu0 0.0
      %881 = vmatprep.subr.mxu0 0.0
      %882 = vmatpush1.msra.mxu0 0.0
      %883 = vmatprep.subr.mxu0 0.0
      %884 = vmatpush1.msra.mxu0 0.0
      %885 = vmatprep.subr.mxu0 0.0
      %886 = vmatpush1.msra.mxu0 0.0
      %887 = vmatprep.subr.mxu0 0.0
      %888 = vmatpush1.msra.mxu0 0.0
      %889 = vmatprep.subr.mxu0 0.0
      %890 = vmatpush1.msra.mxu0 0.0
      %891 = vmatprep.subr.mxu0 0.0
      %892 = vmatpush1.msra.mxu0 0.0
      %893 = vmatprep.subr.mxu0 0.0
      %894 = vmatpush1.msra.mxu0 0.0
      %895 = vmatprep.subr.mxu0 0.0
      %896 = vmatpush1.msra.mxu0 0.0
      %897 = vmatprep.subr.mxu0 0.0
      %898 = vmatpush1.msra.mxu0 0.0
      %899 = vmatprep.subr.mxu0 0.0
      %900 = vmatpush1.msra.mxu0 0.0
      %901 = vmatprep.subr.mxu0 0.0
      %902 = vmatpush1.msra.mxu0 0.0
      %903 = vmatprep.subr.mxu0 0.0
      %904 = vmatpush1.msra.mxu0 0.0
      %905 = vmatprep.subr.mxu0 0.0
      %906 = vmatpush1.msra.mxu0 0.0
      %907 = vmatprep.subr.mxu0 0.0
      %908 = vmatpush1.msra.mxu0 0.0
      %909 = vmatprep.subr.mxu0 0.0
      %910 = vmatpush1.msra.mxu0 0.0
      %911 = vmatprep.mubr.f32.mxu0 0.0
      %912 = vmatmul.mubr.f32.gmra.mrb[0].mxu0 %v842
      %v913 = vpop.f32.mrb[0].mxu0
      %v914 = vadd.f32 %v838, %v913
      %v915 = vpop.f32.mrb[0].mxu0
      %916 = vmatprep.mubr.f32.mxu0 0.0
      %917 = vmatmul.mubr.f32.gmra.mrb[0].mxu0 %v845
      %v918 = vpop.f32.mrb[0].mxu0
      %v919 = vadd.f32 %v838, %v918
      %v920 = vpop.f32.mrb[0].mxu0
      %921 = vdwg.mxu0
      %vm922 = vcmp.gt.f32.partialorder %v914, 0.0
      %vm923 = vcmp.gt.f32.partialorder %v919, 0.0
      %v924 = vmul.f32 %v914, 1.442695
      %v925 = vpow.pop %v924
      %v926 = vmul.f32 %v919, 1.442695
      %v927 = vpow.pop %v926
      %v928 = vsub.f32 %v925, 1.0
      %v929 = vsub.f32 %v927, 1.0
      %v930 = vmul.f32 %v928, 1.6732632
      %v931 = vmul.f32 %v929, 1.6732632
      %v932 = vsel %vm922, %v914, %v930
      %v933 = vsel %vm923, %v919, %v931
      %v934 = vmul.f32 %v932, 1.050701
      %v935 = vmul.f32 %v933, 1.050701
      %v936 = vld [vmem:[%s6] sm:$0xff]
      %v937 = vld [vmem:[%s6 + $0x8] sm:$0xff]
      %v938 = vld [vmem:[%s6 + $0x10] sm:$0xff]
      %v939 = vld [vmem:[%s6 + $0x18] sm:$0xff]
      %v940 = vld [vmem:[%s6 + $0x20] sm:$0xff]
      %v941 = vld [vmem:[%s6 + $0x28] sm:$0xff]
      %v942 = vld [vmem:[%s7] sm:$0x1]
      %v944 = vlaneseq
      %v945 = vshrl.u32 %v944, 7
      %v946 = vsub.s32 0, %v945
      %v947 = vrot.slane %v942, %v946
      %vm949 = vcmask 392192
      %v951 = vsel %vm949, %v934, 0
      %v954 = vsel %vm949, %v935, 0
      %956 = vmatprep.subr.mxu0 0.0
      %957 = vmatpush1.msra.mxu0 %v936
      %958 = vmatprep.subr.mxu0 0.0
      %959 = vmatpush1.msra.mxu0 %v937
      %960 = vmatprep.subr.mxu0 0.0
      %961 = vmatpush1.msra.mxu0 %v938
      %962 = vmatprep.subr.mxu0 0.0
      %963 = vmatpush1.msra.mxu0 %v939
      %964 = vmatprep.subr.mxu0 0.0
      %965 = vmatpush1.msra.mxu0 %v940
      %966 = vmatprep.subr.mxu0 0.0
      %967 = vmatpush1.msra.mxu0 %v941
      %968 = vmatprep.subr.mxu0 0.0
      %969 = vmatpush1.msra.mxu0 0.0
      %970 = vmatprep.subr.mxu0 0.0
      %971 = vmatpush1.msra.mxu0 0.0
      %972 = vmatprep.subr.mxu0 0.0
      %973 = vmatpush1.msra.mxu0 0.0
      %974 = vmatprep.subr.mxu0 0.0
      %975 = vmatpush1.msra.mxu0 0.0
      %976 = vmatprep.subr.mxu0 0.0
      %977 = vmatpush1.msra.mxu0 0.0
      %978 = vmatprep.subr.mxu0 0.0
      %979 = vmatpush1.msra.mxu0 0.0
      %980 = vmatprep.subr.mxu0 0.0
      %981 = vmatpush1.msra.mxu0 0.0
      %982 = vmatprep.subr.mxu0 0.0
      %983 = vmatpush1.msra.mxu0 0.0
      %984 = vmatprep.subr.mxu0 0.0
      %985 = vmatpush1.msra.mxu0 0.0
      %986 = vmatprep.subr.mxu0 0.0
      %987 = vmatpush1.msra.mxu0 0.0
      %988 = vmatprep.subr.mxu0 0.0
      %989 = vmatpush1.msra.mxu0 0.0
      %990 = vmatprep.subr.mxu0 0.0
      %991 = vmatpush1.msra.mxu0 0.0
      %992 = vmatprep.subr.mxu0 0.0
      %993 = vmatpush1.msra.mxu0 0.0
      %994 = vmatprep.subr.mxu0 0.0
      %995 = vmatpush1.msra.mxu0 0.0
      %996 = vmatprep.subr.mxu0 0.0
      %997 = vmatpush1.msra.mxu0 0.0
      %998 = vmatprep.subr.mxu0 0.0
      %999 = vmatpush1.msra.mxu0 0.0
      %1000 = vmatprep.subr.mxu0 0.0
      %1001 = vmatpush1.msra.mxu0 0.0
      %1002 = vmatprep.subr.mxu0 0.0
      %1003 = vmatpush1.msra.mxu0 0.0
      %1004 = vmatprep.subr.mxu0 0.0
      %1005 = vmatpush1.msra.mxu0 0.0
      %1006 = vmatprep.subr.mxu0 0.0
      %1007 = vmatpush1.msra.mxu0 0.0
      %1008 = vmatprep.subr.mxu0 0.0
      %1009 = vmatpush1.msra.mxu0 0.0
      %1010 = vmatprep.subr.mxu0 0.0
      %1011 = vmatpush1.msra.mxu0 0.0
      %1012 = vmatprep.subr.mxu0 0.0
      %1013 = vmatpush1.msra.mxu0 0.0
      %1014 = vmatprep.subr.mxu0 0.0
      %1015 = vmatpush1.msra.mxu0 0.0
      %1016 = vmatprep.subr.mxu0 0.0
      %1017 = vmatpush1.msra.mxu0 0.0
      %1018 = vmatprep.subr.mxu0 0.0
      %1019 = vmatpush1.msra.mxu0 0.0
      %1020 = vmatprep.mubr.f32.mxu0 0.0
      %1021 = vmatmul.mubr.f32.gmra.mrb[0].mxu0 %v951
      %v1022 = vpop.f32.mrb[0].mxu0
      %v1023 = vadd.f32 %v947, %v1022
      %v1024 = vpop.f32.mrb[0].mxu0
      %1025 = vmatprep.mubr.f32.mxu0 0.0
      %1026 = vmatmul.mubr.f32.gmra.mrb[0].mxu0 %v954
      %v1027 = vpop.f32.mrb[0].mxu0
      %v1028 = vadd.f32 %v947, %v1027
      %v1029 = vpop.f32.mrb[0].mxu0
      %1030 = vdwg.mxu0
      %vm1031 = vcmp.gt.f32.partialorder %v1023, 0.0
      %vm1032 = vcmp.gt.f32.partialorder %v1028, 0.0
      %v1033 = vmul.f32 %v1023, 1.442695
      %v1034 = vpow.pop %v1033
      %v1035 = vmul.f32 %v1028, 1.442695
      %v1036 = vpow.pop %v1035
      %v1037 = vsub.f32 %v1034, 1.0
      %v1038 = vsub.f32 %v1036, 1.0
      %v1039 = vmul.f32 %v1037, 1.6732632
      %v1040 = vmul.f32 %v1038, 1.6732632
      %v1041 = vsel %vm1031, %v1023, %v1039
      %v1042 = vsel %vm1032, %v1028, %v1040
      %v1043 = vmul.f32 %v1041, 1.050701
      %v1044 = vmul.f32 %v1042, 1.050701
      %v1045 = vld [vmem:[%s8] sm:$0xff]
      %v1046 = vld [vmem:[%s8 + $0x8] sm:$0xff]
      %v1047 = vld [vmem:[%s8 + $0x10] sm:$0xff]
      %v1048 = vld [vmem:[%s8 + $0x18] sm:$0xff]
      %v1049 = vld [vmem:[%s8 + $0x20] sm:$0xff]
      %v1050 = vld [vmem:[%s8 + $0x28] sm:$0xff]
      %v1051 = vld [vmem:[%s9] sm:$0x1]
      %v1053 = vlaneseq
      %v1054 = vshrl.u32 %v1053, 7
      %v1055 = vsub.s32 0, %v1054
      %v1056 = vrot.slane %v1051, %v1055
      %v1059 = vsel %vm949, %v1043, 0
      %v1062 = vsel %vm949, %v1044, 0
      %1064 = vmatprep.subr.mxu0 0.0
      %1065 = vmatpush1.msra.mxu0 %v1045
      %1066 = vmatprep.subr.mxu0 0.0
      %1067 = vmatpush1.msra.mxu0 %v1046
      %1068 = vmatprep.subr.mxu0 0.0
      %1069 = vmatpush1.msra.mxu0 %v1047
      %1070 = vmatprep.subr.mxu0 0.0
      %1071 = vmatpush1.msra.mxu0 %v1048
      %1072 = vmatprep.subr.mxu0 0.0
      %1073 = vmatpush1.msra.mxu0 %v1049
      %1074 = vmatprep.subr.mxu0 0.0
      %1075 = vmatpush1.msra.mxu0 %v1050
      %1076 = vmatprep.subr.mxu0 0.0
      %1077 = vmatpush1.msra.mxu0 0.0
      %1078 = vmatprep.subr.mxu0 0.0
      %1079 = vmatpush1.msra.mxu0 0.0
      %1080 = vmatprep.subr.mxu0 0.0
      %1081 = vmatpush1.msra.mxu0 0.0
      %1082 = vmatprep.subr.mxu0 0.0
      %1083 = vmatpush1.msra.mxu0 0.0
      %1084 = vmatprep.subr.mxu0 0.0
      %1085 = vmatpush1.msra.mxu0 0.0
      %1086 = vmatprep.subr.mxu0 0.0
      %1087 = vmatpush1.msra.mxu0 0.0
      %1088 = vmatprep.subr.mxu0 0.0
      %1089 = vmatpush1.msra.mxu0 0.0
      %1090 = vmatprep.subr.mxu0 0.0
      %1091 = vmatpush1.msra.mxu0 0.0
      %1092 = vmatprep.subr.mxu0 0.0
      %1093 = vmatpush1.msra.mxu0 0.0
      %1094 = vmatprep.subr.mxu0 0.0
      %1095 = vmatpush1.msra.mxu0 0.0
      %1096 = vmatprep.subr.mxu0 0.0
      %1097 = vmatpush1.msra.mxu0 0.0
      %1098 = vmatprep.subr.mxu0 0.0
      %1099 = vmatpush1.msra.mxu0 0.0
      %1100 = vmatprep.subr.mxu0 0.0
      %1101 = vmatpush1.msra.mxu0 0.0
      %1102 = vmatprep.subr.mxu0 0.0
      %1103 = vmatpush1.msra.mxu0 0.0
      %1104 = vmatprep.subr.mxu0 0.0
      %1105 = vmatpush1.msra.mxu0 0.0
      %1106 = vmatprep.subr.mxu0 0.0
      %1107 = vmatpush1.msra.mxu0 0.0
      %1108 = vmatprep.subr.mxu0 0.0
      %1109 = vmatpush1.msra.mxu0 0.0
      %1110 = vmatprep.subr.mxu0 0.0
      %1111 = vmatpush1.msra.mxu0 0.0
      %1112 = vmatprep.subr.mxu0 0.0
      %1113 = vmatpush1.msra.mxu0 0.0
      %1114 = vmatprep.subr.mxu0 0.0
      %1115 = vmatpush1.msra.mxu0 0.0
      %1116 = vmatprep.subr.mxu0 0.0
      %1117 = vmatpush1.msra.mxu0 0.0
      %1118 = vmatprep.subr.mxu0 0.0
      %1119 = vmatpush1.msra.mxu0 0.0
      %1120 = vmatprep.subr.mxu0 0.0
      %1121 = vmatpush1.msra.mxu0 0.0
      %1122 = vmatprep.subr.mxu0 0.0
      %1123 = vmatpush1.msra.mxu0 0.0
      %1124 = vmatprep.subr.mxu0 0.0
      %1125 = vmatpush1.msra.mxu0 0.0
      %1126 = vmatprep.subr.mxu0 0.0
      %1127 = vmatpush1.msra.mxu0 0.0
      %1128 = vmatprep.mubr.f32.mxu0 0.0
      %1129 = vmatmul.mubr.f32.gmra.mrb[0].mxu0 %v1059
      %v1130 = vpop.f32.mrb[0].mxu0
      %v1131 = vadd.f32 %v1056, %v1130
      %v1132 = vpop.f32.mrb[0].mxu0
      %1133 = vmatprep.mubr.f32.mxu0 0.0
      %1134 = vmatmul.mubr.f32.gmra.mrb[0].mxu0 %v1062
      %v1135 = vpop.f32.mrb[0].mxu0
      %v1136 = vadd.f32 %v1056, %v1135
      %v1137 = vpop.f32.mrb[0].mxu0
      %1138 = vdwg.mxu0
      %1139 = vst [vmem:[%s361] sm:$0xff] %v1131
      %1140 = vst [vmem:[%s361 + $0x8] sm:$0xff] %v1136
      %s1141 = smul.u32 2, %s21
      %p1142 = scmp.lt.s32.totalorder %s1141, 3
      %s1143 = scalar_select %p1142, %s1141, 3
      %s1144 = smul.addr %s1143, 8
      %s1145 = scalar_lea.vmem %s10, %s1144
      // Predicated region
      $region61: #{shapelet_forward.1} parent=59 // pred_check
        %p1146 = pneg %p254
      $region62: #{shapelet_forward.1} parent=59 // pred_check_branch
        %1148 = sbr.rel (%p1146) target = $region64
      $region63: #{shapelet_forward.1} parent=59 // pred_region
        %s1149 = smul.u32 2, %s21
      $region64: #{shapelet_forward.1} parent=59 // pred_fallthru
        _
    $region60: #{shapelet_forward.1} parent=5 // pred_fallthru
      _
    %p1150 = scmp.le.s32.totalorder 2, %s16
    // Predicated region
    $region65: #{shapelet_forward.1} parent=5 // pred_check
      %p1151 = pneg %p1150
    $region66: #{shapelet_forward.1} parent=5 // pred_check_branch
      %1153 = sbr.rel (%p1151) target = $region68
    $region67: #{shapelet_forward.1} parent=5 // pred_region
      %s1154 = ssub.s32 %s16, 2
      // Predicated region
      $region69: #{shapelet_forward.1} parent=67 // pred_check
        %p1155 = pneg %p260
      $region70: #{shapelet_forward.1} parent=67 // pred_check_branch
        %1157 = sbr.rel (%p1155) target = $region72
      $region71: #{shapelet_forward.1} parent=67 // pred_region
        %s1158 = smul.u32 2, %s22
        %p1159 = scmp.lt.s32.totalorder %s1158, 3
        %s1160 = scalar_select %p1159, %s1158, 3
        %s1161 = smul.addr %s1160, 8
        %s1162 = scalar_lea.vmem %s10, %s1161
      $region72: #{shapelet_forward.1} parent=67 // pred_fallthru
        _
    $region68: #{shapelet_forward.1} parent=5 // pred_fallthru
      _
  $region6: #{shapelet_forward.1} parent=0 // loop_footer
    %s20 = sadd.s32 1, %s16
  $region7: #{shapelet_forward.1} parent=0 // loop_footer_branch
    %15 = sbr.rel target = $region3
  $region8: #{shapelet_forward.1} parent=0 // loop_exit
    _

</llo_original>
